<compile_context>
chip_gen: v7x
topology: tpu7x:2x2x1
jax: 0.10.0
libtpu: 0.0.40
codegen_flags: <defaults>
</compile_context>

<pallas_src>
import functools

import jax
import jax.numpy as jnp
import numpy as np
from jax.experimental import pallas as pl
from jax.experimental.pallas import tpu as pltpu


def _round_up(v, m):
    return (v + m - 1) // m * m


# ------------------------------------------------------------------ border / tap masks
def _tap_masks(n, hp, wp):
    """(9, n*hp*wp) 0/1 validity masks, tap-major, tiled per batch element.

    Tap t = (dh+1)*3 + (dw+1) is valid at flat lane p = e*hp*wp + h*wp + w iff
    (h+dh, w+dw) lies inside the image.  Because the N images are concatenated on the
    lane axis, these masks also zero every roll wrap across image/batch boundaries.
    """
    h = np.repeat(np.arange(hp), wp)
    w = np.tile(np.arange(wp), hp)
    rows = []
    for dh in (-1, 0, 1):
        for dw in (-1, 0, 1):
            ok = (h + dh >= 0) & (h + dh < hp) & (w + dw >= 0) & (w + dw < wp)
            rows.append(np.tile(ok.astype(np.float32), n))
    return jnp.asarray(np.stack(rows, axis=0))


# ------------------------------------------------------------------ im2col via roll+mask
def _fill_patches(a, masks, wp, p_ref):
    """p_ref[t*Cpad + ci, :] = a[ci, lanes shifted by tap t] (0 outside the image).

    a:      (Cpad, N*HW)   activation value, channels zero-padded to a multiple of 8
    masks:  (9, N*HW)      precomputed 0/1 border masks
    p_ref:  (9*Cpad, N*HW) VMEM scratch; every tap write is an aligned, unmasked store.
    """
    c, nhw = a.shape
    t = 0
    for dh in (-1, 0, 1):
        for dw in (-1, 0, 1):
            s = dh * wp + dw                                   # flat-lane shift of this tap
            shifted = a if s == 0 else pltpu.roll(a, (-s) % nhw, axis=1)
            p_ref[t * c:(t + 1) * c, :] = shifted * masks[t:t + 1, :]
            t += 1


# ------------------------------------------------------------------ fully fused DoubleConv
def _down_kernel(x_ref, w1_ref, w2_ref, m_ref, g1_ref, b1_ref, g2_ref, b2_ref,
                 o_ref, p1_ref, p2_ref, *, wp, count, eps, cmid_pad):
    # x_ref : (Cpad_in, NHW)      pooled input, channels padded with zeros
    # w1_ref: (Cmid, 9*Cpad_in)   conv1 weights (zero-padded channel columns)
    # w2_ref: (Cout, 9*Cpad_mid)  conv2 weights
    # m_ref : (9, NHW)            border masks
    # g/b   : (C, 1)              BatchNorm gamma / beta
    # o_ref : (Cout, NHW)         final output (lane-dense: NHW is a multiple of 128)
    # p1/p2 : VMEM im2col scratch
    masks = m_ref[...]
    inv = 1.0 / count

    # ---- Conv #1: single MXU matmul, K = 9*Cpad_in ----
    _fill_patches(x_ref[...], masks, wp, p1_ref)
    y1 = jnp.dot(w1_ref[...], p1_ref[...], preferred_element_type=jnp.float32)

    # ---- BN1 (training-mode batch stats over all N*HW lanes, centered var) + ReLU ----
    mean1 = jnp.sum(y1, axis=1, keepdims=True) * inv
    d1 = y1 - mean1
    var1 = jnp.sum(d1 * d1, axis=1, keepdims=True) * inv
    a1 = jnp.maximum(d1 * (g1_ref[...] * jax.lax.rsqrt(var1 + eps)) + b1_ref[...], 0.0)
    if cmid_pad > a1.shape[0]:                     # keep per-tap writes sublane-aligned
        a1 = jnp.concatenate(
            [a1, jnp.zeros((cmid_pad - a1.shape[0], a1.shape[1]), a1.dtype)], axis=0)

    # ---- Conv #2 ----
    _fill_patches(a1, masks, wp, p2_ref)
    y2 = jnp.dot(w2_ref[...], p2_ref[...], preferred_element_type=jnp.float32)

    # ---- BN2 + ReLU epilogue ----
    mean2 = jnp.sum(y2, axis=1, keepdims=True) * inv
    d2 = y2 - mean2
    var2 = jnp.sum(d2 * d2, axis=1, keepdims=True) * inv
    o_ref[...] = jnp.maximum(
        d2 * (g2_ref[...] * jax.lax.rsqrt(var2 + eps)) + b2_ref[...], 0.0)


# -------------------------------------------------------------------- Down forward
def down_forward(x, params, eps=1e-5):
    # x: (N, Cin, H, W) -- PyTorch NCHW layout at the API boundary.
    n, cin, h, w = x.shape
    hp, wp = h // 2, w // 2
    nhw = n * hp * wp
    w1, w2 = params["w1"], params["w2"]            # HWIO: (3,3,Cin,Cmid), (3,3,Cmid,Cout)
    cmid, cout = w1.shape[-1], w2.shape[-1]
    cpad_in, cpad_mid = _round_up(cin, 8), _round_up(cmid, 8)

    # MaxPool2d(2): contiguous reshape + max, left to XLA (review: a dedicated 2-lane-wide
    # pool kernel is pure overhead).  Then layout to (C, N*HW): batch+spatial on lanes.
    pooled = x.reshape(n, cin, hp, 2, wp, 2).max(axis=(3, 5))
    x_flat = pooled.transpose(1, 0, 2, 3).reshape(cin, nhw)
    x_pad = jnp.pad(x_flat, ((0, cpad_in - cin), (0, 0)))

    # Conv weights -> (Cout, 9*Cpad), K order = (kh*3 + kw)*Cpad + ci, matching the
    # in-kernel tap order; padded channel columns are zero.  Conv biases (params["b1"],
    # params["b2"]) are intentionally unused: training-mode BN cancels them exactly.
    w1m = jnp.pad(jnp.transpose(w1, (3, 0, 1, 2)),
                  ((0, 0), (0, 0), (0, 0), (0, cpad_in - cin))).reshape(cmid, 9 * cpad_in)
    w2m = jnp.pad(jnp.transpose(w2, (3, 0, 1, 2)),
                  ((0, 0), (0, 0), (0, 0), (0, cpad_mid - cmid))).reshape(cout, 9 * cpad_mid)
    masks = _tap_masks(n, hp, wp)
    g1 = params["gamma1"].reshape(cmid, 1)
    b1 = params["beta1"].reshape(cmid, 1)
    g2 = params["gamma2"].reshape(cout, 1)
    b2 = params["beta2"].reshape(cout, 1)

    kernel = functools.partial(_down_kernel, wp=wp, count=float(nhw), eps=eps,
                               cmid_pad=cpad_mid)

    # TODO(synk): for v7x megacore at real sizes, add a length>=2 "parallel" spatial-tile
    # grid axis (with a 1-row halo and partial BN sums) instead of this single grid step.
    out_flat = pl.pallas_call(
        kernel,
        out_shape=jax.ShapeDtypeStruct((cout, nhw), jnp.float32),
        grid=(1,),
        in_specs=[
            pl.BlockSpec((cpad_in, nhw), lambda i: (0, 0)),
            pl.BlockSpec((cmid, 9 * cpad_in), lambda i: (0, 0)),
            pl.BlockSpec((cout, 9 * cpad_mid), lambda i: (0, 0)),
            pl.BlockSpec((9, nhw), lambda i: (0, 0)),
            pl.BlockSpec((cmid, 1), lambda i: (0, 0)),
            pl.BlockSpec((cmid, 1), lambda i: (0, 0)),
            pl.BlockSpec((cout, 1), lambda i: (0, 0)),
            pl.BlockSpec((cout, 1), lambda i: (0, 0)),
        ],
        out_specs=pl.BlockSpec((cout, nhw), lambda i: (0, 0)),
        scratch_shapes=[pltpu.VMEM((9 * cpad_in, nhw), jnp.float32),
                        pltpu.VMEM((9 * cpad_mid, nhw), jnp.float32)],
        compiler_params=pltpu.CompilerParams(dimension_semantics=("arbitrary",)),
    )(x_pad, w1m, w2m, masks, g1, b1, g2, b2)

    # (Cout, N*HW) -> (N, Cout, H/2, W/2)
    return out_flat.reshape(cout, n, hp, wp).transpose(1, 0, 2, 3)


# --------------------------------------------------- pure-JAX reference for the self-check
def _reference_down(x, params, eps=1e-5):
    n, c, h, w = x.shape
    z = x.reshape(n, c, h // 2, 2, w // 2, 2).max(axis=(3, 5))

    def conv_bn_relu(z, w_hwio, bias, gamma, beta):
        y = jax.lax.conv_general_dilated(
            z, w_hwio, window_strides=(1, 1), padding="SAME",
            dimension_numbers=("NCHW", "HWIO", "NCHW"))
        y = y + bias[None, :, None, None]          # conv bias (cancelled by training BN)
        mean = y.mean(axis=(0, 2, 3), keepdims=True)
        var = jnp.mean((y - mean) ** 2, axis=(0, 2, 3), keepdims=True)
        yn = (y - mean) / jnp.sqrt(var + eps)
        return jax.nn.relu(yn * gamma[None, :, None, None] + beta[None, :, None, None])

    z = conv_bn_relu(z, params["w1"], params["b1"], params["gamma1"], params["beta1"])
    z = conv_bn_relu(z, params["w2"], params["b2"], params["gamma2"], params["beta2"])
    return z


if __name__ == "__main__":
    in_ch, mid_ch, out_ch = 4, 8, 8                # Down(4, 8): mid == out
    N, H, W = 2, 32, 32                            # pooled 16x16 -> N*HW = 512 lanes (lane-dense)
    key = jax.random.PRNGKey(0)
    k = jax.random.split(key, 10)
    params = {
        "w1": 0.1 * jax.random.normal(k[0], (3, 3, in_ch, mid_ch), jnp.float32),
        "b1": 0.1 * jax.random.normal(k[1], (mid_ch,), jnp.float32),   # cancelled by BN
        "gamma1": 1.0 + 0.1 * jax.random.normal(k[2], (mid_ch,), jnp.float32),
        "beta1": 0.1 * jax.random.normal(k[3], (mid_ch,), jnp.float32),
        "w2": 0.1 * jax.random.normal(k[4], (3, 3, mid_ch, out_ch), jnp.float32),
        "b2": 0.1 * jax.random.normal(k[5], (out_ch,), jnp.float32),   # cancelled by BN
        "gamma2": 1.0 + 0.1 * jax.random.normal(k[6], (out_ch,), jnp.float32),
        "beta2": 0.1 * jax.random.normal(k[7], (out_ch,), jnp.float32),
    }
    x = jax.random.normal(k[8], (N, in_ch, H, W), jnp.float32)         # NCHW like PyTorch

    out = jax.jit(down_forward)(x, params)
    jax.block_until_ready(out)

    ref = _reference_down(x, params)
    assert out.shape == (N, out_ch, H // 2, W // 2), out.shape
    err = float(jnp.max(jnp.abs(out - ref)))
    assert err < 2e-3, f"max abs error vs reference = {err}"
    assert bool(jnp.all(out >= 0.0))               # ReLU output
    print("KERNEL_OK")
</pallas_src>

<mosaic_0001>
module attributes {stable_mosaic.version = 11 : i64} {
  func.func @_down_kernel(%arg0: i32, %arg1: memref<8x512xf32, #tpu.memory_space<vmem>>, %arg2: memref<8x72xf32, #tpu.memory_space<vmem>>, %arg3: memref<8x72xf32, #tpu.memory_space<vmem>>, %arg4: memref<9x512xf32, #tpu.memory_space<vmem>>, %arg5: memref<8x1xf32, #tpu.memory_space<vmem>>, %arg6: memref<8x1xf32, #tpu.memory_space<vmem>>, %arg7: memref<8x1xf32, #tpu.memory_space<vmem>>, %arg8: memref<8x1xf32, #tpu.memory_space<vmem>>, %arg9: memref<8x512xf32, #tpu.memory_space<vmem>>, %arg10: memref<72x512xf32, #tpu.memory_space<vmem>>, %arg11: memref<72x512xf32, #tpu.memory_space<vmem>>) attributes {dimension_semantics = [#tpu.dimension_semantics<arbitrary>], iteration_bounds = array<i64: 1>, scalar_prefetch = 0 : i64, scratch_operands = 2 : i64, tpu.core_type = #tpu.core_type<tc>, window_params = [{pipeline_mode = #tpu.pipeline_mode<synchronous>, transform_indices = @transform_0, window_bounds = array<i64: 8, 512>}, {pipeline_mode = #tpu.pipeline_mode<synchronous>, transform_indices = @transform_1, window_bounds = array<i64: 8, 72>}, {pipeline_mode = #tpu.pipeline_mode<synchronous>, transform_indices = @transform_2, window_bounds = array<i64: 8, 72>}, {pipeline_mode = #tpu.pipeline_mode<synchronous>, transform_indices = @transform_3, window_bounds = array<i64: 9, 512>}, {pipeline_mode = #tpu.pipeline_mode<synchronous>, transform_indices = @transform_4, window_bounds = array<i64: 8, 1>}, {pipeline_mode = #tpu.pipeline_mode<synchronous>, transform_indices = @transform_5, window_bounds = array<i64: 8, 1>}, {pipeline_mode = #tpu.pipeline_mode<synchronous>, transform_indices = @transform_6, window_bounds = array<i64: 8, 1>}, {pipeline_mode = #tpu.pipeline_mode<synchronous>, transform_indices = @transform_7, window_bounds = array<i64: 8, 1>}, {pipeline_mode = #tpu.pipeline_mode<synchronous>, transform_indices = @transform_8, window_bounds = array<i64: 8, 512>}]} {
    %c0 = arith.constant 0 : index
    %c0_0 = arith.constant 0 : index
    %0 = vector.load %arg4[%c0, %c0_0] : memref<9x512xf32, #tpu.memory_space<vmem>>, vector<9x512xf32>
    %c0_1 = arith.constant 0 : index
    %c0_2 = arith.constant 0 : index
    %1 = vector.load %arg1[%c0_1, %c0_2] : memref<8x512xf32, #tpu.memory_space<vmem>>, vector<8x512xf32>
    %c17_i32 = arith.constant 17 : i32
    %2 = tpu.dynamic_rotate %1 by %c17_i32 dim 1 : vector<8x512xf32>, i32 -> vector<8x512xf32>
    %3 = vector.extract_strided_slice %0 {offsets = [0, 0], sizes = [1, 512], strides = [1, 1]} : vector<9x512xf32> to vector<1x512xf32>
    %4 = vector.broadcast %3 : vector<1x512xf32> to vector<8x512xf32>
    %5 = arith.mulf %2, %4 : vector<8x512xf32>
    %c0_3 = arith.constant 0 : index
    %c0_4 = arith.constant 0 : index
    %6 = vector.load %arg10[%c0_3, %c0_4] : memref<72x512xf32, #tpu.memory_space<vmem>>, vector<8x512xf32>
    tpu.vector_store %arg10[%c0_3, %c0_4], %5 {strides = array<i32>} : memref<72x512xf32, #tpu.memory_space<vmem>>, vector<8x512xf32>,
    %c16_i32 = arith.constant 16 : i32
    %7 = tpu.dynamic_rotate %1 by %c16_i32 dim 1 : vector<8x512xf32>, i32 -> vector<8x512xf32>
    %8 = vector.extract_strided_slice %0 {offsets = [1, 0], sizes = [1, 512], strides = [1, 1]} : vector<9x512xf32> to vector<1x512xf32>
    %9 = vector.broadcast %8 : vector<1x512xf32> to vector<8x512xf32>
    %10 = arith.mulf %7, %9 : vector<8x512xf32>
    %c8 = arith.constant 8 : index
    %c0_5 = arith.constant 0 : index
    %11 = vector.load %arg10[%c8, %c0_5] : memref<72x512xf32, #tpu.memory_space<vmem>>, vector<8x512xf32>
    tpu.vector_store %arg10[%c8, %c0_5], %10 {strides = array<i32>} : memref<72x512xf32, #tpu.memory_space<vmem>>, vector<8x512xf32>,
    %c15_i32 = arith.constant 15 : i32
    %12 = tpu.dynamic_rotate %1 by %c15_i32 dim 1 : vector<8x512xf32>, i32 -> vector<8x512xf32>
    %13 = vector.extract_strided_slice %0 {offsets = [2, 0], sizes = [1, 512], strides = [1, 1]} : vector<9x512xf32> to vector<1x512xf32>
    %14 = vector.broadcast %13 : vector<1x512xf32> to vector<8x512xf32>
    %15 = arith.mulf %12, %14 : vector<8x512xf32>
    %c16 = arith.constant 16 : index
    %c0_6 = arith.constant 0 : index
    %16 = vector.load %arg10[%c16, %c0_6] : memref<72x512xf32, #tpu.memory_space<vmem>>, vector<8x512xf32>
    tpu.vector_store %arg10[%c16, %c0_6], %15 {strides = array<i32>} : memref<72x512xf32, #tpu.memory_space<vmem>>, vector<8x512xf32>,
    %c1_i32 = arith.constant 1 : i32
    %17 = tpu.dynamic_rotate %1 by %c1_i32 dim 1 : vector<8x512xf32>, i32 -> vector<8x512xf32>
    %18 = vector.extract_strided_slice %0 {offsets = [3, 0], sizes = [1, 512], strides = [1, 1]} : vector<9x512xf32> to vector<1x512xf32>
    %19 = vector.broadcast %18 : vector<1x512xf32> to vector<8x512xf32>
    %20 = arith.mulf %17, %19 : vector<8x512xf32>
    %c24 = arith.constant 24 : index
    %c0_7 = arith.constant 0 : index
    %21 = vector.load %arg10[%c24, %c0_7] : memref<72x512xf32, #tpu.memory_space<vmem>>, vector<8x512xf32>
    tpu.vector_store %arg10[%c24, %c0_7], %20 {strides = array<i32>} : memref<72x512xf32, #tpu.memory_space<vmem>>, vector<8x512xf32>,
    %22 = vector.extract_strided_slice %0 {offsets = [4, 0], sizes = [1, 512], strides = [1, 1]} : vector<9x512xf32> to vector<1x512xf32>
    %23 = vector.broadcast %22 : vector<1x512xf32> to vector<8x512xf32>
    %24 = arith.mulf %1, %23 : vector<8x512xf32>
    %c32 = arith.constant 32 : index
    %c0_8 = arith.constant 0 : index
    %25 = vector.load %arg10[%c32, %c0_8] : memref<72x512xf32, #tpu.memory_space<vmem>>, vector<8x512xf32>
    tpu.vector_store %arg10[%c32, %c0_8], %24 {strides = array<i32>} : memref<72x512xf32, #tpu.memory_space<vmem>>, vector<8x512xf32>,
    %c511_i32 = arith.constant 511 : i32
    %26 = tpu.dynamic_rotate %1 by %c511_i32 dim 1 : vector<8x512xf32>, i32 -> vector<8x512xf32>
    %27 = vector.extract_strided_slice %0 {offsets = [5, 0], sizes = [1, 512], strides = [1, 1]} : vector<9x512xf32> to vector<1x512xf32>
    %28 = vector.broadcast %27 : vector<1x512xf32> to vector<8x512xf32>
    %29 = arith.mulf %26, %28 : vector<8x512xf32>
    %c40 = arith.constant 40 : index
    %c0_9 = arith.constant 0 : index
    %30 = vector.load %arg10[%c40, %c0_9] : memref<72x512xf32, #tpu.memory_space<vmem>>, vector<8x512xf32>
    tpu.vector_store %arg10[%c40, %c0_9], %29 {strides = array<i32>} : memref<72x512xf32, #tpu.memory_space<vmem>>, vector<8x512xf32>,
    %c497_i32 = arith.constant 497 : i32
    %31 = tpu.dynamic_rotate %1 by %c497_i32 dim 1 : vector<8x512xf32>, i32 -> vector<8x512xf32>
    %32 = vector.extract_strided_slice %0 {offsets = [6, 0], sizes = [1, 512], strides = [1, 1]} : vector<9x512xf32> to vector<1x512xf32>
    %33 = vector.broadcast %32 : vector<1x512xf32> to vector<8x512xf32>
    %34 = arith.mulf %31, %33 : vector<8x512xf32>
    %c48 = arith.constant 48 : index
    %c0_10 = arith.constant 0 : index
    %35 = vector.load %arg10[%c48, %c0_10] : memref<72x512xf32, #tpu.memory_space<vmem>>, vector<8x512xf32>
    tpu.vector_store %arg10[%c48, %c0_10], %34 {strides = array<i32>} : memref<72x512xf32, #tpu.memory_space<vmem>>, vector<8x512xf32>,
    %c496_i32 = arith.constant 496 : i32
    %36 = tpu.dynamic_rotate %1 by %c496_i32 dim 1 : vector<8x512xf32>, i32 -> vector<8x512xf32>
    %37 = vector.extract_strided_slice %0 {offsets = [7, 0], sizes = [1, 512], strides = [1, 1]} : vector<9x512xf32> to vector<1x512xf32>
    %38 = vector.broadcast %37 : vector<1x512xf32> to vector<8x512xf32>
    %39 = arith.mulf %36, %38 : vector<8x512xf32>
    %c56 = arith.constant 56 : index
    %c0_11 = arith.constant 0 : index
    %40 = vector.load %arg10[%c56, %c0_11] : memref<72x512xf32, #tpu.memory_space<vmem>>, vector<8x512xf32>
    tpu.vector_store %arg10[%c56, %c0_11], %39 {strides = array<i32>} : memref<72x512xf32, #tpu.memory_space<vmem>>, vector<8x512xf32>,
    %c495_i32 = arith.constant 495 : i32
    %41 = tpu.dynamic_rotate %1 by %c495_i32 dim 1 : vector<8x512xf32>, i32 -> vector<8x512xf32>
    %42 = vector.extract_strided_slice %0 {offsets = [8, 0], sizes = [1, 512], strides = [1, 1]} : vector<9x512xf32> to vector<1x512xf32>
    %43 = vector.broadcast %42 : vector<1x512xf32> to vector<8x512xf32>
    %44 = arith.mulf %41, %43 : vector<8x512xf32>
    %c64 = arith.constant 64 : index
    %c0_12 = arith.constant 0 : index
    %45 = vector.load %arg10[%c64, %c0_12] : memref<72x512xf32, #tpu.memory_space<vmem>>, vector<8x512xf32>
    tpu.vector_store %arg10[%c64, %c0_12], %44 {strides = array<i32>} : memref<72x512xf32, #tpu.memory_space<vmem>>, vector<8x512xf32>,
    %c0_13 = arith.constant 0 : index
    %c0_14 = arith.constant 0 : index
    %46 = vector.load %arg2[%c0_13, %c0_14] : memref<8x72xf32, #tpu.memory_space<vmem>>, vector<8x72xf32>
    %c0_15 = arith.constant 0 : index
    %c0_16 = arith.constant 0 : index
    %47 = vector.load %arg10[%c0_15, %c0_16] : memref<72x512xf32, #tpu.memory_space<vmem>>, vector<72x512xf32>
    %cst = arith.constant dense<0.000000e+00> : vector<8x512xf32>
    %48 = tpu.matmul %46, %47, %cst {dimension_numbers = #tpu.dot_dimension_numbers<[1], [0], [0], [1], [0, 0, 1, 1], [], []>} : vector<8x72xf32>, vector<72x512xf32>, vector<8x512xf32> -> vector<8x512xf32>
    %cst_17 = arith.constant dense<0.000000e+00> : vector<8xf32>
    %49 = vector.multi_reduction <add>, %48, %cst_17 [1] : vector<8x512xf32> to vector<8xf32>
    %50 = vector.shape_cast %49 : vector<8xf32> to vector<8x1xf32>
    %cst_18 = arith.constant 0.001953125 : f32
    %51 = vector.broadcast %cst_18 : f32 to vector<8x1xf32>
    %52 = arith.mulf %50, %51 : vector<8x1xf32>
    %53 = vector.broadcast %52 : vector<8x1xf32> to vector<8x512xf32>
    %54 = arith.subf %48, %53 : vector<8x512xf32>
    %55 = arith.mulf %54, %54 : vector<8x512xf32>
    %cst_19 = arith.constant dense<0.000000e+00> : vector<8xf32>
    %56 = vector.multi_reduction <add>, %55, %cst_19 [1] : vector<8x512xf32> to vector<8xf32>
    %57 = vector.shape_cast %56 : vector<8xf32> to vector<8x1xf32>
    %cst_20 = arith.constant 0.001953125 : f32
    %58 = vector.broadcast %cst_20 : f32 to vector<8x1xf32>
    %59 = arith.mulf %57, %58 : vector<8x1xf32>
    %c0_21 = arith.constant 0 : index
    %c0_22 = arith.constant 0 : index
    %60 = vector.load %arg5[%c0_21, %c0_22] : memref<8x1xf32, #tpu.memory_space<vmem>>, vector<8x1xf32>
    %cst_23 = arith.constant 9.99999974E-6 : f32
    %61 = vector.broadcast %cst_23 : f32 to vector<8x1xf32>
    %62 = arith.addf %59, %61 : vector<8x1xf32>
    %63 = math.rsqrt %62 : vector<8x1xf32>
    %64 = arith.mulf %60, %63 : vector<8x1xf32>
    %65 = vector.broadcast %64 : vector<8x1xf32> to vector<8x512xf32>
    %66 = arith.mulf %54, %65 : vector<8x512xf32>
    %c0_24 = arith.constant 0 : index
    %c0_25 = arith.constant 0 : index
    %67 = vector.load %arg6[%c0_24, %c0_25] : memref<8x1xf32, #tpu.memory_space<vmem>>, vector<8x1xf32>
    %68 = vector.broadcast %67 : vector<8x1xf32> to vector<8x512xf32>
    %69 = arith.addf %66, %68 : vector<8x512xf32>
    %cst_26 = arith.constant 0.000000e+00 : f32
    %70 = vector.broadcast %cst_26 : f32 to vector<8x512xf32>
    %71 = arith.maximumf %69, %70 : vector<8x512xf32>
    %c17_i32_27 = arith.constant 17 : i32
    %72 = tpu.dynamic_rotate %71 by %c17_i32_27 dim 1 : vector<8x512xf32>, i32 -> vector<8x512xf32>
    %73 = vector.extract_strided_slice %0 {offsets = [0, 0], sizes = [1, 512], strides = [1, 1]} : vector<9x512xf32> to vector<1x512xf32>
    %74 = vector.broadcast %73 : vector<1x512xf32> to vector<8x512xf32>
    %75 = arith.mulf %72, %74 : vector<8x512xf32>
    %c0_28 = arith.constant 0 : index
    %c0_29 = arith.constant 0 : index
    %76 = vector.load %arg11[%c0_28, %c0_29] : memref<72x512xf32, #tpu.memory_space<vmem>>, vector<8x512xf32>
    tpu.vector_store %arg11[%c0_28, %c0_29], %75 {strides = array<i32>} : memref<72x512xf32, #tpu.memory_space<vmem>>, vector<8x512xf32>,
    %c16_i32_30 = arith.constant 16 : i32
    %77 = tpu.dynamic_rotate %71 by %c16_i32_30 dim 1 : vector<8x512xf32>, i32 -> vector<8x512xf32>
    %78 = vector.extract_strided_slice %0 {offsets = [1, 0], sizes = [1, 512], strides = [1, 1]} : vector<9x512xf32> to vector<1x512xf32>
    %79 = vector.broadcast %78 : vector<1x512xf32> to vector<8x512xf32>
    %80 = arith.mulf %77, %79 : vector<8x512xf32>
    %c8_31 = arith.constant 8 : index
    %c0_32 = arith.constant 0 : index
    %81 = vector.load %arg11[%c8_31, %c0_32] : memref<72x512xf32, #tpu.memory_space<vmem>>, vector<8x512xf32>
    tpu.vector_store %arg11[%c8_31, %c0_32], %80 {strides = array<i32>} : memref<72x512xf32, #tpu.memory_space<vmem>>, vector<8x512xf32>,
    %c15_i32_33 = arith.constant 15 : i32
    %82 = tpu.dynamic_rotate %71 by %c15_i32_33 dim 1 : vector<8x512xf32>, i32 -> vector<8x512xf32>
    %83 = vector.extract_strided_slice %0 {offsets = [2, 0], sizes = [1, 512], strides = [1, 1]} : vector<9x512xf32> to vector<1x512xf32>
    %84 = vector.broadcast %83 : vector<1x512xf32> to vector<8x512xf32>
    %85 = arith.mulf %82, %84 : vector<8x512xf32>
    %c16_34 = arith.constant 16 : index
    %c0_35 = arith.constant 0 : index
    %86 = vector.load %arg11[%c16_34, %c0_35] : memref<72x512xf32, #tpu.memory_space<vmem>>, vector<8x512xf32>
    tpu.vector_store %arg11[%c16_34, %c0_35], %85 {strides = array<i32>} : memref<72x512xf32, #tpu.memory_space<vmem>>, vector<8x512xf32>,
    %c1_i32_36 = arith.constant 1 : i32
    %87 = tpu.dynamic_rotate %71 by %c1_i32_36 dim 1 : vector<8x512xf32>, i32 -> vector<8x512xf32>
    %88 = vector.extract_strided_slice %0 {offsets = [3, 0], sizes = [1, 512], strides = [1, 1]} : vector<9x512xf32> to vector<1x512xf32>
    %89 = vector.broadcast %88 : vector<1x512xf32> to vector<8x512xf32>
    %90 = arith.mulf %87, %89 : vector<8x512xf32>
    %c24_37 = arith.constant 24 : index
    %c0_38 = arith.constant 0 : index
    %91 = vector.load %arg11[%c24_37, %c0_38] : memref<72x512xf32, #tpu.memory_space<vmem>>, vector<8x512xf32>
    tpu.vector_store %arg11[%c24_37, %c0_38], %90 {strides = array<i32>} : memref<72x512xf32, #tpu.memory_space<vmem>>, vector<8x512xf32>,
    %92 = vector.extract_strided_slice %0 {offsets = [4, 0], sizes = [1, 512], strides = [1, 1]} : vector<9x512xf32> to vector<1x512xf32>
    %93 = vector.broadcast %92 : vector<1x512xf32> to vector<8x512xf32>
    %94 = arith.mulf %71, %93 : vector<8x512xf32>
    %c32_39 = arith.constant 32 : index
    %c0_40 = arith.constant 0 : index
    %95 = vector.load %arg11[%c32_39, %c0_40] : memref<72x512xf32, #tpu.memory_space<vmem>>, vector<8x512xf32>
    tpu.vector_store %arg11[%c32_39, %c0_40], %94 {strides = array<i32>} : memref<72x512xf32, #tpu.memory_space<vmem>>, vector<8x512xf32>,
    %c511_i32_41 = arith.constant 511 : i32
    %96 = tpu.dynamic_rotate %71 by %c511_i32_41 dim 1 : vector<8x512xf32>, i32 -> vector<8x512xf32>
    %97 = vector.extract_strided_slice %0 {offsets = [5, 0], sizes = [1, 512], strides = [1, 1]} : vector<9x512xf32> to vector<1x512xf32>
    %98 = vector.broadcast %97 : vector<1x512xf32> to vector<8x512xf32>
    %99 = arith.mulf %96, %98 : vector<8x512xf32>
    %c40_42 = arith.constant 40 : index
    %c0_43 = arith.constant 0 : index
    %100 = vector.load %arg11[%c40_42, %c0_43] : memref<72x512xf32, #tpu.memory_space<vmem>>, vector<8x512xf32>
    tpu.vector_store %arg11[%c40_42, %c0_43], %99 {strides = array<i32>} : memref<72x512xf32, #tpu.memory_space<vmem>>, vector<8x512xf32>,
    %c497_i32_44 = arith.constant 497 : i32
    %101 = tpu.dynamic_rotate %71 by %c497_i32_44 dim 1 : vector<8x512xf32>, i32 -> vector<8x512xf32>
    %102 = vector.extract_strided_slice %0 {offsets = [6, 0], sizes = [1, 512], strides = [1, 1]} : vector<9x512xf32> to vector<1x512xf32>
    %103 = vector.broadcast %102 : vector<1x512xf32> to vector<8x512xf32>
    %104 = arith.mulf %101, %103 : vector<8x512xf32>
    %c48_45 = arith.constant 48 : index
    %c0_46 = arith.constant 0 : index
    %105 = vector.load %arg11[%c48_45, %c0_46] : memref<72x512xf32, #tpu.memory_space<vmem>>, vector<8x512xf32>
    tpu.vector_store %arg11[%c48_45, %c0_46], %104 {strides = array<i32>} : memref<72x512xf32, #tpu.memory_space<vmem>>, vector<8x512xf32>,
    %c496_i32_47 = arith.constant 496 : i32
    %106 = tpu.dynamic_rotate %71 by %c496_i32_47 dim 1 : vector<8x512xf32>, i32 -> vector<8x512xf32>
    %107 = vector.extract_strided_slice %0 {offsets = [7, 0], sizes = [1, 512], strides = [1, 1]} : vector<9x512xf32> to vector<1x512xf32>
    %108 = vector.broadcast %107 : vector<1x512xf32> to vector<8x512xf32>
    %109 = arith.mulf %106, %108 : vector<8x512xf32>
    %c56_48 = arith.constant 56 : index
    %c0_49 = arith.constant 0 : index
    %110 = vector.load %arg11[%c56_48, %c0_49] : memref<72x512xf32, #tpu.memory_space<vmem>>, vector<8x512xf32>
    tpu.vector_store %arg11[%c56_48, %c0_49], %109 {strides = array<i32>} : memref<72x512xf32, #tpu.memory_space<vmem>>, vector<8x512xf32>,
    %c495_i32_50 = arith.constant 495 : i32
    %111 = tpu.dynamic_rotate %71 by %c495_i32_50 dim 1 : vector<8x512xf32>, i32 -> vector<8x512xf32>
    %112 = vector.extract_strided_slice %0 {offsets = [8, 0], sizes = [1, 512], strides = [1, 1]} : vector<9x512xf32> to vector<1x512xf32>
    %113 = vector.broadcast %112 : vector<1x512xf32> to vector<8x512xf32>
    %114 = arith.mulf %111, %113 : vector<8x512xf32>
    %c64_51 = arith.constant 64 : index
    %c0_52 = arith.constant 0 : index
    %115 = vector.load %arg11[%c64_51, %c0_52] : memref<72x512xf32, #tpu.memory_space<vmem>>, vector<8x512xf32>
    tpu.vector_store %arg11[%c64_51, %c0_52], %114 {strides = array<i32>} : memref<72x512xf32, #tpu.memory_space<vmem>>, vector<8x512xf32>,
    %c0_53 = arith.constant 0 : index
    %c0_54 = arith.constant 0 : index
    %116 = vector.load %arg3[%c0_53, %c0_54] : memref<8x72xf32, #tpu.memory_space<vmem>>, vector<8x72xf32>
    %c0_55 = arith.constant 0 : index
    %c0_56 = arith.constant 0 : index
    %117 = vector.load %arg11[%c0_55, %c0_56] : memref<72x512xf32, #tpu.memory_space<vmem>>, vector<72x512xf32>
    %cst_57 = arith.constant dense<0.000000e+00> : vector<8x512xf32>
    %118 = tpu.matmul %116, %117, %cst_57 {dimension_numbers = #tpu.dot_dimension_numbers<[1], [0], [0], [1], [0, 0, 1, 1], [], []>} : vector<8x72xf32>, vector<72x512xf32>, vector<8x512xf32> -> vector<8x512xf32>
    %cst_58 = arith.constant dense<0.000000e+00> : vector<8xf32>
    %119 = vector.multi_reduction <add>, %118, %cst_58 [1] : vector<8x512xf32> to vector<8xf32>
    %120 = vector.shape_cast %119 : vector<8xf32> to vector<8x1xf32>
    %cst_59 = arith.constant 0.001953125 : f32
    %121 = vector.broadcast %cst_59 : f32 to vector<8x1xf32>
    %122 = arith.mulf %120, %121 : vector<8x1xf32>
    %123 = vector.broadcast %122 : vector<8x1xf32> to vector<8x512xf32>
    %124 = arith.subf %118, %123 : vector<8x512xf32>
    %125 = arith.mulf %124, %124 : vector<8x512xf32>
    %cst_60 = arith.constant dense<0.000000e+00> : vector<8xf32>
    %126 = vector.multi_reduction <add>, %125, %cst_60 [1] : vector<8x512xf32> to vector<8xf32>
    %127 = vector.shape_cast %126 : vector<8xf32> to vector<8x1xf32>
    %cst_61 = arith.constant 0.001953125 : f32
    %128 = vector.broadcast %cst_61 : f32 to vector<8x1xf32>
    %129 = arith.mulf %127, %128 : vector<8x1xf32>
    %c0_62 = arith.constant 0 : index
    %c0_63 = arith.constant 0 : index
    %130 = vector.load %arg7[%c0_62, %c0_63] : memref<8x1xf32, #tpu.memory_space<vmem>>, vector<8x1xf32>
    %cst_64 = arith.constant 9.99999974E-6 : f32
    %131 = vector.broadcast %cst_64 : f32 to vector<8x1xf32>
    %132 = arith.addf %129, %131 : vector<8x1xf32>
    %133 = math.rsqrt %132 : vector<8x1xf32>
    %134 = arith.mulf %130, %133 : vector<8x1xf32>
    %135 = vector.broadcast %134 : vector<8x1xf32> to vector<8x512xf32>
    %136 = arith.mulf %124, %135 : vector<8x512xf32>
    %c0_65 = arith.constant 0 : index
    %c0_66 = arith.constant 0 : index
    %137 = vector.load %arg8[%c0_65, %c0_66] : memref<8x1xf32, #tpu.memory_space<vmem>>, vector<8x1xf32>
    %138 = vector.broadcast %137 : vector<8x1xf32> to vector<8x512xf32>
    %139 = arith.addf %136, %138 : vector<8x512xf32>
    %cst_67 = arith.constant 0.000000e+00 : f32
    %140 = vector.broadcast %cst_67 : f32 to vector<8x512xf32>
    %141 = arith.maximumf %139, %140 : vector<8x512xf32>
    %c0_68 = arith.constant 0 : index
    %c0_69 = arith.constant 0 : index
    %142 = vector.load %arg9[%c0_68, %c0_69] : memref<8x512xf32, #tpu.memory_space<vmem>>, vector<8x512xf32>
    tpu.vector_store %arg9[%c0_68, %c0_69], %141 {strides = array<i32>} : memref<8x512xf32, #tpu.memory_space<vmem>>, vector<8x512xf32>,
    return
  }
  func.func @transform_0(%arg0: i32) -> (i32, i32) {
    %c0_i32 = arith.constant 0 : i32
    %c0_i32_0 = arith.constant 0 : i32
    %c0_i32_1 = arith.constant 0 : i32
    return %c0_i32, %c0_i32_0 : i32, i32
  }
  func.func @transform_1(%arg0: i32) -> (i32, i32) {
    %c0_i32 = arith.constant 0 : i32
    %c0_i32_0 = arith.constant 0 : i32
    %c0_i32_1 = arith.constant 0 : i32
    return %c0_i32, %c0_i32_0 : i32, i32
  }
  func.func @transform_2(%arg0: i32) -> (i32, i32) {
    %c0_i32 = arith.constant 0 : i32
    %c0_i32_0 = arith.constant 0 : i32
    %c0_i32_1 = arith.constant 0 : i32
    return %c0_i32, %c0_i32_0 : i32, i32
  }
  func.func @transform_3(%arg0: i32) -> (i32, i32) {
    %c0_i32 = arith.constant 0 : i32
    %c0_i32_0 = arith.constant 0 : i32
    %c0_i32_1 = arith.constant 0 : i32
    return %c0_i32, %c0_i32_0 : i32, i32
  }
  func.func @transform_4(%arg0: i32) -> (i32, i32) {
    %c0_i32 = arith.constant 0 : i32
    %c0_i32_0 = arith.constant 0 : i32
    %c0_i32_1 = arith.constant 0 : i32
    return %c0_i32, %c0_i32_0 : i32, i32
  }
  func.func @transform_5(%arg0: i32) -> (i32, i32) {
    %c0_i32 = arith.constant 0 : i32
    %c0_i32_0 = arith.constant 0 : i32
    %c0_i32_1 = arith.constant 0 : i32
    return %c0_i32, %c0_i32_0 : i32, i32
  }
  func.func @transform_6(%arg0: i32) -> (i32, i32) {
    %c0_i32 = arith.constant 0 : i32
    %c0_i32_0 = arith.constant 0 : i32
    %c0_i32_1 = arith.constant 0 : i32
    return %c0_i32, %c0_i32_0 : i32, i32
  }
  func.func @transform_7(%arg0: i32) -> (i32, i32) {
    %c0_i32 = arith.constant 0 : i32
    %c0_i32_0 = arith.constant 0 : i32
    %c0_i32_1 = arith.constant 0 : i32
    return %c0_i32, %c0_i32_0 : i32, i32
  }
  func.func @transform_8(%arg0: i32) -> (i32, i32) {
    %c0_i32 = arith.constant 0 : i32
    %c0_i32_0 = arith.constant 0 : i32
    %c0_i32_1 = arith.constant 0 : i32
    return %c0_i32, %c0_i32_0 : i32, i32
  }
}

</mosaic_0001>

<llo_original>
// kernel: down_forward.1
$region0: #{down_forward.1}
  #allocation0 [shape = 'u32[]', space=smem, size = 0x4, offset = 0x4, fixed_abs, tag = 'smem constant byte address 0x4 - core index']
  #allocation1 [shape = 'u32[144,128]{1,0:T(1,128)}', space=vmem, size = 0x12000, scoped, tag = 'internal scratch']
  #allocation2 [shape = 'f32[72,512]{1,0:T(8,128)}', space=vmem, size = 0x24000, scoped, tag = 'scratch operand']
  #allocation3 [shape = 'f32[72,512]{1,0:T(8,128)}', space=vmem, size = 0x24000, scoped, tag = 'scratch operand']
  %s0 = inlined_call_operand.vmem [shape: f32[8,512], index: 0, kind: input, shape index: {}]
  %s1 = inlined_call_operand.vmem [shape: f32[8,72], index: 1, kind: input, shape index: {}]
  %s2 = inlined_call_operand.vmem [shape: f32[8,72], index: 2, kind: input, shape index: {}]
  %s3 = inlined_call_operand.vmem [shape: f32[9,512], index: 3, kind: input, shape index: {}]
  %s4 = inlined_call_operand.vmem [shape: f32[8,1], index: 4, kind: input, shape index: {}]
  %s5 = inlined_call_operand.vmem [shape: f32[8,1], index: 5, kind: input, shape index: {}]
  %s6 = inlined_call_operand.vmem [shape: f32[8,1], index: 6, kind: input, shape index: {}]
  %s7 = inlined_call_operand.vmem [shape: f32[8,1], index: 7, kind: input, shape index: {}]
  %s8 = inlined_call_operand.vmem [shape: f32[8,512], index: 8, kind: output, shape index: {}]
  %s9 = sld [smem:[#allocation0]]
  $region42: #{down_forward.1} parent=0
    _
  %s11 = ssub.s32 1, %s9
  %s12 = scalar_select 0, %s11, %s9
  // Predicated region
  $region2: #{down_forward.1} parent=0 // pred_check
    _
  $region3: #{down_forward.1} parent=0 // pred_check_branch
    %14 = sbr.rel (0) target = $region5
  $region4: #{down_forward.1} parent=0 // pred_region
    _
  $region5: #{down_forward.1} parent=0 // pred_fallthru
    _
  // Predicated region
  $region6: #{down_forward.1} parent=0 // pred_check
    _
  $region7: #{down_forward.1} parent=0 // pred_check_branch
    %16 = sbr.rel (0) target = $region9
  $region8: #{down_forward.1} parent=0 // pred_region
    _
  $region9: #{down_forward.1} parent=0 // pred_fallthru
    _
  // Predicated region
  $region10: #{down_forward.1} parent=0 // pred_check
    _
  $region11: #{down_forward.1} parent=0 // pred_check_branch
    %18 = sbr.rel (0) target = $region13
  $region12: #{down_forward.1} parent=0 // pred_region
    _
  $region13: #{down_forward.1} parent=0 // pred_fallthru
    _
  // Predicated region
  $region14: #{down_forward.1} parent=0 // pred_check
    _
  $region15: #{down_forward.1} parent=0 // pred_check_branch
    %20 = sbr.rel (0) target = $region17
  $region16: #{down_forward.1} parent=0 // pred_region
    _
  $region17: #{down_forward.1} parent=0 // pred_fallthru
    _
  // Predicated region
  $region18: #{down_forward.1} parent=0 // pred_check
    _
  $region19: #{down_forward.1} parent=0 // pred_check_branch
    %22 = sbr.rel (0) target = $region21
  $region20: #{down_forward.1} parent=0 // pred_region
    _
  $region21: #{down_forward.1} parent=0 // pred_fallthru
    _
  // Predicated region
  $region22: #{down_forward.1} parent=0 // pred_check
    _
  $region23: #{down_forward.1} parent=0 // pred_check_branch
    %24 = sbr.rel (0) target = $region25
  $region24: #{down_forward.1} parent=0 // pred_region
    _
  $region25: #{down_forward.1} parent=0 // pred_fallthru
    _
  // Predicated region
  $region26: #{down_forward.1} parent=0 // pred_check
    _
  $region27: #{down_forward.1} parent=0 // pred_check_branch
    %26 = sbr.rel (0) target = $region29
  $region28: #{down_forward.1} parent=0 // pred_region
    _
  $region29: #{down_forward.1} parent=0 // pred_fallthru
    _
  // Predicated region
  $region30: #{down_forward.1} parent=0 // pred_check
    _
  $region31: #{down_forward.1} parent=0 // pred_check_branch
    %28 = sbr.rel (0) target = $region33
  $region32: #{down_forward.1} parent=0 // pred_region
    _
  $region33: #{down_forward.1} parent=0 // pred_fallthru
    _
  %v29 = vld [vmem:[%s3] sm:$0xff]
  %v30 = vld [vmem:[%s3 + $0x8] sm:$0xff]
  %v31 = vld [vmem:[%s3 + $0x10] sm:$0xff]
  %v32 = vld [vmem:[%s3 + $0x18] sm:$0xff]
  %v33 = vld [vmem:[%s3 + $0x20] sm:$0x1]
  %v34 = vld [vmem:[%s3 + $0x28] sm:$0x1]
  %v35 = vld [vmem:[%s3 + $0x30] sm:$0x1]
  %v36 = vld [vmem:[%s3 + $0x38] sm:$0x1]
  %v37 = vld [vmem:[%s0] sm:$0xff]
  %v38 = vld [vmem:[%s0 + $0x8] sm:$0xff]
  %v39 = vld [vmem:[%s0 + $0x10] sm:$0xff]
  %v40 = vld [vmem:[%s0 + $0x18] sm:$0xff]
  %41 = vrot.lane.b32.xlu0 %v37, 17
  %v42 = vpop.permute.xlu0 %41
  %43 = vrot.lane.b32.xlu0 %v38, 17
  %v44 = vpop.permute.xlu0 %43
  %45 = vrot.lane.b32.xlu0 %v39, 17
  %v46 = vpop.permute.xlu0 %45
  %47 = vrot.lane.b32.xlu0 %v40, 17
  %v48 = vpop.permute.xlu0 %47
  %v49 = vlaneseq
  %v50 = vand.u32 %v49, 127
  %vm51 = vcmp.lt.s32.totalorder %v50, 17
  %v52 = vsel %vm51, %v46, %v48
  %v53 = vsel %vm51, %v44, %v46
  %v54 = vsel %vm51, %v42, %v44
  %v55 = vsel %vm51, %v48, %v42
  %v56 = vlaneseq
  %v57 = vshrl.u32 %v56, 7
  %v58 = vsub.s32 0, %v57
  %v59 = vrot.slane %v29, %v58
  %v60 = vlaneseq
  %v61 = vshrl.u32 %v60, 7
  %v62 = vsub.s32 0, %v61
  %v63 = vrot.slane %v30, %v62
  %v64 = vlaneseq
  %v65 = vshrl.u32 %v64, 7
  %v66 = vsub.s32 0, %v65
  %v67 = vrot.slane %v31, %v66
  %v68 = vlaneseq
  %v69 = vshrl.u32 %v68, 7
  %v70 = vsub.s32 0, %v69
  %v71 = vrot.slane %v32, %v70
  %v72 = vmul.f32 %v55, %v59
  %v73 = vmul.f32 %v54, %v63
  %v74 = vmul.f32 %v53, %v67
  %v75 = vmul.f32 %v52, %v71
  %76 = vst [vmem:[#allocation2] sm:$0xff] %v72
  %77 = vst [vmem:[#allocation2 + $0x8] sm:$0xff] %v73
  %78 = vst [vmem:[#allocation2 + $0x10] sm:$0xff] %v74
  %79 = vst [vmem:[#allocation2 + $0x18] sm:$0xff] %v75
  %80 = vrot.lane.b32.xlu0 %v37, 16
  %v81 = vpop.permute.xlu0 %80
  %82 = vrot.lane.b32.xlu0 %v38, 16
  %v83 = vpop.permute.xlu0 %82
  %84 = vrot.lane.b32.xlu0 %v39, 16
  %v85 = vpop.permute.xlu0 %84
  %86 = vrot.lane.b32.xlu0 %v40, 16
  %v87 = vpop.permute.xlu0 %86
  %vm88 = vcmp.lt.s32.totalorder %v50, 16
  %v89 = vsel %vm88, %v85, %v87
  %v90 = vsel %vm88, %v83, %v85
  %v91 = vsel %vm88, %v81, %v83
  %v92 = vsel %vm88, %v87, %v81
  %v93 = vlaneseq
  %v94 = vshrl.u32 %v93, 7
  %v95 = vsub.s32 1, %v94
  %v96 = vrot.slane %v29, %v95
  %v97 = vlaneseq
  %v98 = vshrl.u32 %v97, 7
  %v99 = vsub.s32 1, %v98
  %v100 = vrot.slane %v30, %v99
  %v101 = vlaneseq
  %v102 = vshrl.u32 %v101, 7
  %v103 = vsub.s32 1, %v102
  %v104 = vrot.slane %v31, %v103
  %v105 = vlaneseq
  %v106 = vshrl.u32 %v105, 7
  %v107 = vsub.s32 1, %v106
  %v108 = vrot.slane %v32, %v107
  %v109 = vmul.f32 %v92, %v96
  %v110 = vmul.f32 %v91, %v100
  %v111 = vmul.f32 %v90, %v104
  %v112 = vmul.f32 %v89, %v108
  %113 = vst [vmem:[#allocation2 + $0x20] sm:$0xff] %v109
  %114 = vst [vmem:[#allocation2 + $0x28] sm:$0xff] %v110
  %115 = vst [vmem:[#allocation2 + $0x30] sm:$0xff] %v111
  %116 = vst [vmem:[#allocation2 + $0x38] sm:$0xff] %v112
  %117 = vrot.lane.b32.xlu0 %v37, 15
  %v118 = vpop.permute.xlu0 %117
  %119 = vrot.lane.b32.xlu0 %v38, 15
  %v120 = vpop.permute.xlu0 %119
  %121 = vrot.lane.b32.xlu0 %v39, 15
  %v122 = vpop.permute.xlu0 %121
  %123 = vrot.lane.b32.xlu0 %v40, 15
  %v124 = vpop.permute.xlu0 %123
  %vm125 = vcmp.lt.s32.totalorder %v50, 15
  %v126 = vsel %vm125, %v122, %v124
  %v127 = vsel %vm125, %v120, %v122
  %v128 = vsel %vm125, %v118, %v120
  %v129 = vsel %vm125, %v124, %v118
  %v130 = vlaneseq
  %v131 = vshrl.u32 %v130, 7
  %v132 = vsub.s32 2, %v131
  %v133 = vrot.slane %v29, %v132
  %v134 = vlaneseq
  %v135 = vshrl.u32 %v134, 7
  %v136 = vsub.s32 2, %v135
  %v137 = vrot.slane %v30, %v136
  %v138 = vlaneseq
  %v139 = vshrl.u32 %v138, 7
  %v140 = vsub.s32 2, %v139
  %v141 = vrot.slane %v31, %v140
  %v142 = vlaneseq
  %v143 = vshrl.u32 %v142, 7
  %v144 = vsub.s32 2, %v143
  %v145 = vrot.slane %v32, %v144
  %v146 = vmul.f32 %v129, %v133
  %v147 = vmul.f32 %v128, %v137
  %v148 = vmul.f32 %v127, %v141
  %v149 = vmul.f32 %v126, %v145
  %150 = vst [vmem:[#allocation2 + $0x40] sm:$0xff] %v146
  %151 = vst [vmem:[#allocation2 + $0x48] sm:$0xff] %v147
  %152 = vst [vmem:[#allocation2 + $0x50] sm:$0xff] %v148
  %153 = vst [vmem:[#allocation2 + $0x58] sm:$0xff] %v149
  %154 = vrot.lane.b32.xlu0 %v37, 1
  %v155 = vpop.permute.xlu0 %154
  %156 = vrot.lane.b32.xlu0 %v38, 1
  %v157 = vpop.permute.xlu0 %156
  %158 = vrot.lane.b32.xlu0 %v39, 1
  %v159 = vpop.permute.xlu0 %158
  %160 = vrot.lane.b32.xlu0 %v40, 1
  %v161 = vpop.permute.xlu0 %160
  %vm162 = vcmp.lt.s32.totalorder %v50, 1
  %v163 = vsel %vm162, %v159, %v161
  %v164 = vsel %vm162, %v157, %v159
  %v165 = vsel %vm162, %v155, %v157
  %v166 = vsel %vm162, %v161, %v155
  %v167 = vlaneseq
  %v168 = vshrl.u32 %v167, 7
  %v169 = vsub.s32 3, %v168
  %v170 = vrot.slane %v29, %v169
  %v171 = vlaneseq
  %v172 = vshrl.u32 %v171, 7
  %v173 = vsub.s32 3, %v172
  %v174 = vrot.slane %v30, %v173
  %v175 = vlaneseq
  %v176 = vshrl.u32 %v175, 7
  %v177 = vsub.s32 3, %v176
  %v178 = vrot.slane %v31, %v177
  %v179 = vlaneseq
  %v180 = vshrl.u32 %v179, 7
  %v181 = vsub.s32 3, %v180
  %v182 = vrot.slane %v32, %v181
  %v183 = vmul.f32 %v166, %v170
  %v184 = vmul.f32 %v165, %v174
  %v185 = vmul.f32 %v164, %v178
  %v186 = vmul.f32 %v163, %v182
  %187 = vst [vmem:[#allocation2 + $0x60] sm:$0xff] %v183
  %188 = vst [vmem:[#allocation2 + $0x68] sm:$0xff] %v184
  %189 = vst [vmem:[#allocation2 + $0x70] sm:$0xff] %v185
  %190 = vst [vmem:[#allocation2 + $0x78] sm:$0xff] %v186
  %v191 = vlaneseq
  %v192 = vshrl.u32 %v191, 7
  %v193 = vsub.s32 4, %v192
  %v194 = vrot.slane %v29, %v193
  %v195 = vlaneseq
  %v196 = vshrl.u32 %v195, 7
  %v197 = vsub.s32 4, %v196
  %v198 = vrot.slane %v30, %v197
  %v199 = vlaneseq
  %v200 = vshrl.u32 %v199, 7
  %v201 = vsub.s32 4, %v200
  %v202 = vrot.slane %v31, %v201
  %v203 = vlaneseq
  %v204 = vshrl.u32 %v203, 7
  %v205 = vsub.s32 4, %v204
  %v206 = vrot.slane %v32, %v205
  %v207 = vmul.f32 %v37, %v194
  %v208 = vmul.f32 %v38, %v198
  %v209 = vmul.f32 %v39, %v202
  %v210 = vmul.f32 %v40, %v206
  %211 = vst [vmem:[#allocation2 + $0x80] sm:$0xff] %v207
  %212 = vst [vmem:[#allocation2 + $0x88] sm:$0xff] %v208
  %213 = vst [vmem:[#allocation2 + $0x90] sm:$0xff] %v209
  %214 = vst [vmem:[#allocation2 + $0x98] sm:$0xff] %v210
  %215 = vrot.lane.b32.xlu0 %v37, 127
  %v216 = vpop.permute.xlu0 %215
  %217 = vrot.lane.b32.xlu0 %v38, 127
  %v218 = vpop.permute.xlu0 %217
  %219 = vrot.lane.b32.xlu0 %v39, 127
  %v220 = vpop.permute.xlu0 %219
  %221 = vrot.lane.b32.xlu0 %v40, 127
  %v222 = vpop.permute.xlu0 %221
  %vm223 = vcmp.lt.s32.totalorder %v50, 127
  %v224 = vsel %vm223, %v220, %v222
  %v225 = vsel %vm223, %v218, %v220
  %v226 = vsel %vm223, %v216, %v218
  %v227 = vsel %vm223, %v222, %v216
  %v228 = vlaneseq
  %v229 = vshrl.u32 %v228, 7
  %v230 = vsub.s32 5, %v229
  %v231 = vrot.slane %v29, %v230
  %v232 = vlaneseq
  %v233 = vshrl.u32 %v232, 7
  %v234 = vsub.s32 5, %v233
  %v235 = vrot.slane %v30, %v234
  %v236 = vlaneseq
  %v237 = vshrl.u32 %v236, 7
  %v238 = vsub.s32 5, %v237
  %v239 = vrot.slane %v31, %v238
  %v240 = vlaneseq
  %v241 = vshrl.u32 %v240, 7
  %v242 = vsub.s32 5, %v241
  %v243 = vrot.slane %v32, %v242
  %v244 = vmul.f32 %v226, %v231
  %v245 = vmul.f32 %v225, %v235
  %v246 = vmul.f32 %v224, %v239
  %v247 = vmul.f32 %v227, %v243
  %248 = vst [vmem:[#allocation2 + $0xa0] sm:$0xff] %v244
  %249 = vst [vmem:[#allocation2 + $0xa8] sm:$0xff] %v245
  %250 = vst [vmem:[#allocation2 + $0xb0] sm:$0xff] %v246
  %251 = vst [vmem:[#allocation2 + $0xb8] sm:$0xff] %v247
  %252 = vrot.lane.b32.xlu0 %v37, 113
  %v253 = vpop.permute.xlu0 %252
  %254 = vrot.lane.b32.xlu0 %v38, 113
  %v255 = vpop.permute.xlu0 %254
  %256 = vrot.lane.b32.xlu0 %v39, 113
  %v257 = vpop.permute.xlu0 %256
  %258 = vrot.lane.b32.xlu0 %v40, 113
  %v259 = vpop.permute.xlu0 %258
  %vm260 = vcmp.lt.s32.totalorder %v50, 113
  %v261 = vsel %vm260, %v257, %v259
  %v262 = vsel %vm260, %v255, %v257
  %v263 = vsel %vm260, %v253, %v255
  %v264 = vsel %vm260, %v259, %v253
  %v265 = vlaneseq
  %v266 = vshrl.u32 %v265, 7
  %v267 = vsub.s32 6, %v266
  %v268 = vrot.slane %v29, %v267
  %v269 = vlaneseq
  %v270 = vshrl.u32 %v269, 7
  %v271 = vsub.s32 6, %v270
  %v272 = vrot.slane %v30, %v271
  %v273 = vlaneseq
  %v274 = vshrl.u32 %v273, 7
  %v275 = vsub.s32 6, %v274
  %v276 = vrot.slane %v31, %v275
  %v277 = vlaneseq
  %v278 = vshrl.u32 %v277, 7
  %v279 = vsub.s32 6, %v278
  %v280 = vrot.slane %v32, %v279
  %v281 = vmul.f32 %v263, %v268
  %v282 = vmul.f32 %v262, %v272
  %v283 = vmul.f32 %v261, %v276
  %v284 = vmul.f32 %v264, %v280
  %285 = vst [vmem:[#allocation2 + $0xc0] sm:$0xff] %v281
  %286 = vst [vmem:[#allocation2 + $0xc8] sm:$0xff] %v282
  %287 = vst [vmem:[#allocation2 + $0xd0] sm:$0xff] %v283
  %288 = vst [vmem:[#allocation2 + $0xd8] sm:$0xff] %v284
  %289 = vrot.lane.b32.xlu0 %v37, 112
  %v290 = vpop.permute.xlu0 %289
  %291 = vrot.lane.b32.xlu0 %v38, 112
  %v292 = vpop.permute.xlu0 %291
  %293 = vrot.lane.b32.xlu0 %v39, 112
  %v294 = vpop.permute.xlu0 %293
  %295 = vrot.lane.b32.xlu0 %v40, 112
  %v296 = vpop.permute.xlu0 %295
  %vm297 = vcmp.lt.s32.totalorder %v50, 112
  %v298 = vsel %vm297, %v294, %v296
  %v299 = vsel %vm297, %v292, %v294
  %v300 = vsel %vm297, %v290, %v292
  %v301 = vsel %vm297, %v296, %v290
  %v302 = vlaneseq
  %v303 = vshrl.u32 %v302, 7
  %v304 = vsub.s32 7, %v303
  %v305 = vrot.slane %v29, %v304
  %v306 = vlaneseq
  %v307 = vshrl.u32 %v306, 7
  %v308 = vsub.s32 7, %v307
  %v309 = vrot.slane %v30, %v308
  %v310 = vlaneseq
  %v311 = vshrl.u32 %v310, 7
  %v312 = vsub.s32 7, %v311
  %v313 = vrot.slane %v31, %v312
  %v314 = vlaneseq
  %v315 = vshrl.u32 %v314, 7
  %v316 = vsub.s32 7, %v315
  %v317 = vrot.slane %v32, %v316
  %v318 = vmul.f32 %v300, %v305
  %v319 = vmul.f32 %v299, %v309
  %v320 = vmul.f32 %v298, %v313
  %v321 = vmul.f32 %v301, %v317
  %322 = vst [vmem:[#allocation2 + $0xe0] sm:$0xff] %v318
  %323 = vst [vmem:[#allocation2 + $0xe8] sm:$0xff] %v319
  %324 = vst [vmem:[#allocation2 + $0xf0] sm:$0xff] %v320
  %325 = vst [vmem:[#allocation2 + $0xf8] sm:$0xff] %v321
  %326 = vrot.lane.b32.xlu0 %v37, 111
  %v327 = vpop.permute.xlu0 %326
  %328 = vrot.lane.b32.xlu0 %v38, 111
  %v329 = vpop.permute.xlu0 %328
  %330 = vrot.lane.b32.xlu0 %v39, 111
  %v331 = vpop.permute.xlu0 %330
  %332 = vrot.lane.b32.xlu0 %v40, 111
  %v333 = vpop.permute.xlu0 %332
  %vm334 = vcmp.lt.s32.totalorder %v50, 111
  %v335 = vsel %vm334, %v331, %v333
  %v336 = vsel %vm334, %v329, %v331
  %v337 = vsel %vm334, %v327, %v329
  %v338 = vsel %vm334, %v333, %v327
  %v339 = vlaneseq
  %v340 = vshrl.u32 %v339, 7
  %v341 = vsub.s32 0, %v340
  %v342 = vrot.slane %v33, %v341
  %v343 = vlaneseq
  %v344 = vshrl.u32 %v343, 7
  %v345 = vsub.s32 0, %v344
  %v346 = vrot.slane %v34, %v345
  %v347 = vlaneseq
  %v348 = vshrl.u32 %v347, 7
  %v349 = vsub.s32 0, %v348
  %v350 = vrot.slane %v35, %v349
  %v351 = vlaneseq
  %v352 = vshrl.u32 %v351, 7
  %v353 = vsub.s32 0, %v352
  %v354 = vrot.slane %v36, %v353
  %v355 = vmul.f32 %v337, %v342
  %v356 = vmul.f32 %v336, %v346
  %v357 = vmul.f32 %v335, %v350
  %v358 = vmul.f32 %v338, %v354
  %359 = vst [vmem:[#allocation2 + $0x100] sm:$0xff] %v355
  %360 = vst [vmem:[#allocation2 + $0x108] sm:$0xff] %v356
  %361 = vst [vmem:[#allocation2 + $0x110] sm:$0xff] %v357
  %362 = vst [vmem:[#allocation2 + $0x118] sm:$0xff] %v358
  %v363 = vld [vmem:[%s1] sm:$0xff]
  %v364 = vld [vmem:[#allocation2] sm:$0xff]
  %v365 = vld [vmem:[#allocation2 + $0x8] sm:$0xff]
  %v366 = vld [vmem:[#allocation2 + $0x10] sm:$0xff]
  %v367 = vld [vmem:[#allocation2 + $0x18] sm:$0xff]
  %v368 = vld [vmem:[#allocation2 + $0x20] sm:$0xff]
  %v369 = vld [vmem:[#allocation2 + $0x28] sm:$0xff]
  %v370 = vld [vmem:[#allocation2 + $0x30] sm:$0xff]
  %v371 = vld [vmem:[#allocation2 + $0x38] sm:$0xff]
  %v372 = vld [vmem:[#allocation2 + $0x40] sm:$0xff]
  %v373 = vld [vmem:[#allocation2 + $0x48] sm:$0xff]
  %v374 = vld [vmem:[#allocation2 + $0x50] sm:$0xff]
  %v375 = vld [vmem:[#allocation2 + $0x58] sm:$0xff]
  %v376 = vld [vmem:[#allocation2 + $0x60] sm:$0xff]
  %v377 = vld [vmem:[#allocation2 + $0x68] sm:$0xff]
  %v378 = vld [vmem:[#allocation2 + $0x70] sm:$0xff]
  %v379 = vld [vmem:[#allocation2 + $0x78] sm:$0xff]
  %v380 = vld [vmem:[#allocation2 + $0x80] sm:$0xff]
  %v381 = vld [vmem:[#allocation2 + $0x88] sm:$0xff]
  %v382 = vld [vmem:[#allocation2 + $0x90] sm:$0xff]
  %v383 = vld [vmem:[#allocation2 + $0x98] sm:$0xff]
  %v384 = vld [vmem:[#allocation2 + $0xa0] sm:$0xff]
  %v385 = vld [vmem:[#allocation2 + $0xa8] sm:$0xff]
  %v386 = vld [vmem:[#allocation2 + $0xb0] sm:$0xff]
  %v387 = vld [vmem:[#allocation2 + $0xb8] sm:$0xff]
  %v388 = vld [vmem:[#allocation2 + $0xc0] sm:$0xff]
  %v389 = vld [vmem:[#allocation2 + $0xc8] sm:$0xff]
  %v390 = vld [vmem:[#allocation2 + $0xd0] sm:$0xff]
  %v391 = vld [vmem:[#allocation2 + $0xd8] sm:$0xff]
  %v392 = vld [vmem:[#allocation2 + $0xe0] sm:$0xff]
  %v393 = vld [vmem:[#allocation2 + $0xe8] sm:$0xff]
  %v394 = vld [vmem:[#allocation2 + $0xf0] sm:$0xff]
  %v395 = vld [vmem:[#allocation2 + $0xf8] sm:$0xff]
  %v396 = vld [vmem:[#allocation2 + $0x100] sm:$0xff]
  %v397 = vld [vmem:[#allocation2 + $0x108] sm:$0xff]
  %v398 = vld [vmem:[#allocation2 + $0x110] sm:$0xff]
  %v399 = vld [vmem:[#allocation2 + $0x118] sm:$0xff]
  %vm400 = vcmask 588800
  %v402 = vsel %vm400, %v363, 0
  %404 = vmatprep.subr.mxu0 %v365
  %405 = vmatpush1.msra.mxu0 %v364
  %406 = vmatprep.subr.mxu0 %v369
  %407 = vmatpush1.msra.mxu0 %v368
  %408 = vmatprep.subr.mxu0 %v373
  %409 = vmatpush1.msra.mxu0 %v372
  %410 = vmatprep.subr.mxu0 %v377
  %411 = vmatpush1.msra.mxu0 %v376
  %412 = vmatprep.subr.mxu0 %v381
  %413 = vmatpush1.msra.mxu0 %v380
  %414 = vmatprep.subr.mxu0 %v385
  %415 = vmatpush1.msra.mxu0 %v384
  %416 = vmatprep.subr.mxu0 %v389
  %417 = vmatpush1.msra.mxu0 %v388
  %418 = vmatprep.subr.mxu0 %v393
  %419 = vmatpush1.msra.mxu0 %v392
  %420 = vmatprep.subr.mxu0 %v397
  %421 = vmatpush1.msra.mxu0 %v396
  %422 = vmatprep.subr.mxu0 0.0
  %423 = vmatpush1.msra.mxu0 0.0
  %424 = vmatprep.subr.mxu0 0.0
  %425 = vmatpush1.msra.mxu0 0.0
  %426 = vmatprep.subr.mxu0 0.0
  %427 = vmatpush1.msra.mxu0 0.0
  %428 = vmatprep.subr.mxu0 0.0
  %429 = vmatpush1.msra.mxu0 0.0
  %430 = vmatprep.subr.mxu0 0.0
  %431 = vmatpush1.msra.mxu0 0.0
  %432 = vmatprep.subr.mxu0 0.0
  %433 = vmatpush1.msra.mxu0 0.0
  %434 = vmatprep.subr.mxu0 0.0
  %435 = vmatpush1.msra.mxu0 0.0
  %436 = vmatprep.subr.mxu0 0.0
  %437 = vmatpush1.msra.mxu0 0.0
  %438 = vmatprep.subr.mxu0 0.0
  %439 = vmatpush1.msra.mxu0 0.0
  %440 = vmatprep.subr.mxu0 0.0
  %441 = vmatpush1.msra.mxu0 0.0
  %442 = vmatprep.subr.mxu0 0.0
  %443 = vmatpush1.msra.mxu0 0.0
  %444 = vmatprep.subr.mxu0 0.0
  %445 = vmatpush1.msra.mxu0 0.0
  %446 = vmatprep.subr.mxu0 0.0
  %447 = vmatpush1.msra.mxu0 0.0
  %448 = vmatprep.subr.mxu0 0.0
  %449 = vmatpush1.msra.mxu0 0.0
  %450 = vmatprep.subr.mxu0 0.0
  %451 = vmatpush1.msra.mxu0 0.0
  %452 = vmatprep.subr.mxu0 0.0
  %453 = vmatpush1.msra.mxu0 0.0
  %454 = vmatprep.subr.mxu0 0.0
  %455 = vmatpush1.msra.mxu0 0.0
  %456 = vmatprep.subr.mxu0 0.0
  %457 = vmatpush1.msra.mxu0 0.0
  %458 = vmatprep.subr.mxu0 0.0
  %459 = vmatpush1.msra.mxu0 0.0
  %460 = vmatprep.subr.mxu0 0.0
  %461 = vmatpush1.msra.mxu0 0.0
  %462 = vmatprep.subr.mxu0 0.0
  %463 = vmatpush1.msra.mxu0 0.0
  %464 = vmatprep.subr.mxu0 0.0
  %465 = vmatpush1.msra.mxu0 0.0
  %466 = vmatprep.subr.mxu0 0.0
  %467 = vmatpush1.msra.mxu0 0.0
  %468 = vmatprep.mubr.f32.mxu0 0.0
  %469 = vmatmul.mubr.f32.gmra.mrb[0].mxu0 %v402
  %v470 = vpop.f32.mrb[0].mxu0
  %v471 = vadd.f32 0.0, %v470
  %v472 = vpop.f32.mrb[0].mxu0
  %v473 = vadd.f32 0.0, %v472
  %474 = vdwg.mxu0
  %475 = vmatprep.subr.mxu0 %v367
  %476 = vmatpush1.msra.mxu0 %v366
  %477 = vmatprep.subr.mxu0 %v371
  %478 = vmatpush1.msra.mxu0 %v370
  %479 = vmatprep.subr.mxu0 %v375
  %480 = vmatpush1.msra.mxu0 %v374
  %481 = vmatprep.subr.mxu0 %v379
  %482 = vmatpush1.msra.mxu0 %v378
  %483 = vmatprep.subr.mxu0 %v383
  %484 = vmatpush1.msra.mxu0 %v382
  %485 = vmatprep.subr.mxu0 %v387
  %486 = vmatpush1.msra.mxu0 %v386
  %487 = vmatprep.subr.mxu0 %v391
  %488 = vmatpush1.msra.mxu0 %v390
  %489 = vmatprep.subr.mxu0 %v395
  %490 = vmatpush1.msra.mxu0 %v394
  %491 = vmatprep.subr.mxu0 %v399
  %492 = vmatpush1.msra.mxu0 %v398
  %493 = vmatprep.subr.mxu0 0.0
  %494 = vmatpush1.msra.mxu0 0.0
  %495 = vmatprep.subr.mxu0 0.0
  %496 = vmatpush1.msra.mxu0 0.0
  %497 = vmatprep.subr.mxu0 0.0
  %498 = vmatpush1.msra.mxu0 0.0
  %499 = vmatprep.subr.mxu0 0.0
  %500 = vmatpush1.msra.mxu0 0.0
  %501 = vmatprep.subr.mxu0 0.0
  %502 = vmatpush1.msra.mxu0 0.0
  %503 = vmatprep.subr.mxu0 0.0
  %504 = vmatpush1.msra.mxu0 0.0
  %505 = vmatprep.subr.mxu0 0.0
  %506 = vmatpush1.msra.mxu0 0.0
  %507 = vmatprep.subr.mxu0 0.0
  %508 = vmatpush1.msra.mxu0 0.0
  %509 = vmatprep.subr.mxu0 0.0
  %510 = vmatpush1.msra.mxu0 0.0
  %511 = vmatprep.subr.mxu0 0.0
  %512 = vmatpush1.msra.mxu0 0.0
  %513 = vmatprep.subr.mxu0 0.0
  %514 = vmatpush1.msra.mxu0 0.0
  %515 = vmatprep.subr.mxu0 0.0
  %516 = vmatpush1.msra.mxu0 0.0
  %517 = vmatprep.subr.mxu0 0.0
  %518 = vmatpush1.msra.mxu0 0.0
  %519 = vmatprep.subr.mxu0 0.0
  %520 = vmatpush1.msra.mxu0 0.0
  %521 = vmatprep.subr.mxu0 0.0
  %522 = vmatpush1.msra.mxu0 0.0
  %523 = vmatprep.subr.mxu0 0.0
  %524 = vmatpush1.msra.mxu0 0.0
  %525 = vmatprep.subr.mxu0 0.0
  %526 = vmatpush1.msra.mxu0 0.0
  %527 = vmatprep.subr.mxu0 0.0
  %528 = vmatpush1.msra.mxu0 0.0
  %529 = vmatprep.subr.mxu0 0.0
  %530 = vmatpush1.msra.mxu0 0.0
  %531 = vmatprep.subr.mxu0 0.0
  %532 = vmatpush1.msra.mxu0 0.0
  %533 = vmatprep.subr.mxu0 0.0
  %534 = vmatpush1.msra.mxu0 0.0
  %535 = vmatprep.subr.mxu0 0.0
  %536 = vmatpush1.msra.mxu0 0.0
  %537 = vmatprep.subr.mxu0 0.0
  %538 = vmatpush1.msra.mxu0 0.0
  %539 = vmatprep.mubr.f32.mxu0 0.0
  %540 = vmatmul.mubr.f32.gmra.mrb[0].mxu0 %v402
  %v541 = vpop.f32.mrb[0].mxu0
  %v542 = vadd.f32 0.0, %v541
  %v543 = vpop.f32.mrb[0].mxu0
  %v544 = vadd.f32 0.0, %v543
  %545 = vdwg.mxu0
  %v546 = vadd.f32 %v471, %v473
  %v547 = vadd.f32 %v546, %v542
  %v548 = vadd.f32 %v547, %v544
  %549 = vadd.xlane.f32.xlu0 %v548
  %v550 = vpop.xlane.xlu0 %549
  %v551 = vmul.f32 %v550, 0.001953125
  %v552 = vsub.f32 %v471, %v551
  %v553 = vsub.f32 %v473, %v551
  %v554 = vsub.f32 %v542, %v551
  %v555 = vsub.f32 %v544, %v551
  %v556 = vmul.f32 %v552, %v552
  %v557 = vmul.f32 %v553, %v553
  %v558 = vmul.f32 %v554, %v554
  %v559 = vmul.f32 %v555, %v555
  %v560 = vadd.f32 %v556, %v557
  %v561 = vadd.f32 %v560, %v558
  %v562 = vadd.f32 %v561, %v559
  %563 = vadd.xlane.f32.xlu0 %v562
  %v564 = vpop.xlane.xlu0 %563
  %v565 = vmul.f32 %v564, 0.001953125
  %v566 = vld [vmem:[%s4] sm:$0xff]
  %v567 = vadd.f32 %v565, 1e-05
  %v568 = vrsqrt.pop %v567
  %v569 = vmul.f32 %v566, %v568
  %571 = vset.pattern.permute.xlu0 0
  %572 = vperm.xlu0 %571, %v569
  %v573 = vpop.permute.xlu0 %572
  %v575 = vmul.f32 %v552, %v573
  %v576 = vmul.f32 %v553, %v573
  %v577 = vmul.f32 %v554, %v573
  %v578 = vmul.f32 %v555, %v573
  %v579 = vld [vmem:[%s5] sm:$0xff]
  %581 = vset.pattern.permute.xlu0 0
  %582 = vperm.xlu0 %581, %v579
  %v583 = vpop.permute.xlu0 %582
  %v585 = vadd.f32 %v575, %v583
  %v586 = vadd.f32 %v576, %v583
  %v587 = vadd.f32 %v577, %v583
  %v588 = vadd.f32 %v578, %v583
  %v589 = vmax.f32 %v585, 0.0
  %v590 = vmax.f32 %v586, 0.0
  %v591 = vmax.f32 %v587, 0.0
  %v592 = vmax.f32 %v588, 0.0
  %593 = vrot.lane.b32.xlu0 %v589, 17
  %v594 = vpop.permute.xlu0 %593
  %595 = vrot.lane.b32.xlu0 %v590, 17
  %v596 = vpop.permute.xlu0 %595
  %597 = vrot.lane.b32.xlu0 %v591, 17
  %v598 = vpop.permute.xlu0 %597
  %599 = vrot.lane.b32.xlu0 %v592, 17
  %v600 = vpop.permute.xlu0 %599
  %v601 = vsel %vm51, %v598, %v600
  %v602 = vsel %vm51, %v596, %v598
  %v603 = vsel %vm51, %v594, %v596
  %v604 = vsel %vm51, %v600, %v594
  %v605 = vmul.f32 %v604, %v59
  %v606 = vmul.f32 %v603, %v63
  %v607 = vmul.f32 %v602, %v67
  %v608 = vmul.f32 %v601, %v71
  %609 = vst [vmem:[#allocation3] sm:$0xff] %v605
  %610 = vst [vmem:[#allocation3 + $0x8] sm:$0xff] %v606
  %611 = vst [vmem:[#allocation3 + $0x10] sm:$0xff] %v607
  %612 = vst [vmem:[#allocation3 + $0x18] sm:$0xff] %v608
  %613 = vrot.lane.b32.xlu0 %v589, 16
  %v614 = vpop.permute.xlu0 %613
  %615 = vrot.lane.b32.xlu0 %v590, 16
  %v616 = vpop.permute.xlu0 %615
  %617 = vrot.lane.b32.xlu0 %v591, 16
  %v618 = vpop.permute.xlu0 %617
  %619 = vrot.lane.b32.xlu0 %v592, 16
  %v620 = vpop.permute.xlu0 %619
  %v621 = vsel %vm88, %v618, %v620
  %v622 = vsel %vm88, %v616, %v618
  %v623 = vsel %vm88, %v614, %v616
  %v624 = vsel %vm88, %v620, %v614
  %v625 = vmul.f32 %v624, %v96
  %v626 = vmul.f32 %v623, %v100
  %v627 = vmul.f32 %v622, %v104
  %v628 = vmul.f32 %v621, %v108
  %629 = vst [vmem:[#allocation3 + $0x20] sm:$0xff] %v625
  %630 = vst [vmem:[#allocation3 + $0x28] sm:$0xff] %v626
  %631 = vst [vmem:[#allocation3 + $0x30] sm:$0xff] %v627
  %632 = vst [vmem:[#allocation3 + $0x38] sm:$0xff] %v628
  %633 = vrot.lane.b32.xlu0 %v589, 15
  %v634 = vpop.permute.xlu0 %633
  %635 = vrot.lane.b32.xlu0 %v590, 15
  %v636 = vpop.permute.xlu0 %635
  %637 = vrot.lane.b32.xlu0 %v591, 15
  %v638 = vpop.permute.xlu0 %637
  %639 = vrot.lane.b32.xlu0 %v592, 15
  %v640 = vpop.permute.xlu0 %639
  %v641 = vsel %vm125, %v638, %v640
  %v642 = vsel %vm125, %v636, %v638
  %v643 = vsel %vm125, %v634, %v636
  %v644 = vsel %vm125, %v640, %v634
  %v645 = vmul.f32 %v644, %v133
  %v646 = vmul.f32 %v643, %v137
  %v647 = vmul.f32 %v642, %v141
  %v648 = vmul.f32 %v641, %v145
  %649 = vst [vmem:[#allocation3 + $0x40] sm:$0xff] %v645
  %650 = vst [vmem:[#allocation3 + $0x48] sm:$0xff] %v646
  %651 = vst [vmem:[#allocation3 + $0x50] sm:$0xff] %v647
  %652 = vst [vmem:[#allocation3 + $0x58] sm:$0xff] %v648
  %653 = vrot.lane.b32.xlu0 %v589, 1
  %v654 = vpop.permute.xlu0 %653
  %655 = vrot.lane.b32.xlu0 %v590, 1
  %v656 = vpop.permute.xlu0 %655
  %657 = vrot.lane.b32.xlu0 %v591, 1
  %v658 = vpop.permute.xlu0 %657
  %659 = vrot.lane.b32.xlu0 %v592, 1
  %v660 = vpop.permute.xlu0 %659
  %v661 = vsel %vm162, %v658, %v660
  %v662 = vsel %vm162, %v656, %v658
  %v663 = vsel %vm162, %v654, %v656
  %v664 = vsel %vm162, %v660, %v654
  %v665 = vmul.f32 %v664, %v170
  %v666 = vmul.f32 %v663, %v174
  %v667 = vmul.f32 %v662, %v178
  %v668 = vmul.f32 %v661, %v182
  %669 = vst [vmem:[#allocation3 + $0x60] sm:$0xff] %v665
  %670 = vst [vmem:[#allocation3 + $0x68] sm:$0xff] %v666
  %671 = vst [vmem:[#allocation3 + $0x70] sm:$0xff] %v667
  %672 = vst [vmem:[#allocation3 + $0x78] sm:$0xff] %v668
  %v673 = vmul.f32 %v589, %v194
  %v674 = vmul.f32 %v590, %v198
  %v675 = vmul.f32 %v591, %v202
  %v676 = vmul.f32 %v592, %v206
  %677 = vst [vmem:[#allocation3 + $0x80] sm:$0xff] %v673
  %678 = vst [vmem:[#allocation3 + $0x88] sm:$0xff] %v674
  %679 = vst [vmem:[#allocation3 + $0x90] sm:$0xff] %v675
  %680 = vst [vmem:[#allocation3 + $0x98] sm:$0xff] %v676
  %681 = vrot.lane.b32.xlu0 %v589, 127
  %v682 = vpop.permute.xlu0 %681
  %683 = vrot.lane.b32.xlu0 %v590, 127
  %v684 = vpop.permute.xlu0 %683
  %685 = vrot.lane.b32.xlu0 %v591, 127
  %v686 = vpop.permute.xlu0 %685
  %687 = vrot.lane.b32.xlu0 %v592, 127
  %v688 = vpop.permute.xlu0 %687
  %v689 = vsel %vm223, %v686, %v688
  %v690 = vsel %vm223, %v684, %v686
  %v691 = vsel %vm223, %v682, %v684
  %v692 = vsel %vm223, %v688, %v682
  %v693 = vmul.f32 %v691, %v231
  %v694 = vmul.f32 %v690, %v235
  %v695 = vmul.f32 %v689, %v239
  %v696 = vmul.f32 %v692, %v243
  %697 = vst [vmem:[#allocation3 + $0xa0] sm:$0xff] %v693
  %698 = vst [vmem:[#allocation3 + $0xa8] sm:$0xff] %v694
  %699 = vst [vmem:[#allocation3 + $0xb0] sm:$0xff] %v695
  %700 = vst [vmem:[#allocation3 + $0xb8] sm:$0xff] %v696
  %701 = vrot.lane.b32.xlu0 %v589, 113
  %v702 = vpop.permute.xlu0 %701
  %703 = vrot.lane.b32.xlu0 %v590, 113
  %v704 = vpop.permute.xlu0 %703
  %705 = vrot.lane.b32.xlu0 %v591, 113
  %v706 = vpop.permute.xlu0 %705
  %707 = vrot.lane.b32.xlu0 %v592, 113
  %v708 = vpop.permute.xlu0 %707
  %v709 = vsel %vm260, %v706, %v708
  %v710 = vsel %vm260, %v704, %v706
  %v711 = vsel %vm260, %v702, %v704
  %v712 = vsel %vm260, %v708, %v702
  %v713 = vmul.f32 %v711, %v268
  %v714 = vmul.f32 %v710, %v272
  %v715 = vmul.f32 %v709, %v276
  %v716 = vmul.f32 %v712, %v280
  %717 = vst [vmem:[#allocation3 + $0xc0] sm:$0xff] %v713
  %718 = vst [vmem:[#allocation3 + $0xc8] sm:$0xff] %v714
  %719 = vst [vmem:[#allocation3 + $0xd0] sm:$0xff] %v715
  %720 = vst [vmem:[#allocation3 + $0xd8] sm:$0xff] %v716
  %721 = vrot.lane.b32.xlu0 %v589, 112
  %v722 = vpop.permute.xlu0 %721
  %723 = vrot.lane.b32.xlu0 %v590, 112
  %v724 = vpop.permute.xlu0 %723
  %725 = vrot.lane.b32.xlu0 %v591, 112
  %v726 = vpop.permute.xlu0 %725
  %727 = vrot.lane.b32.xlu0 %v592, 112
  %v728 = vpop.permute.xlu0 %727
  %v729 = vsel %vm297, %v726, %v728
  %v730 = vsel %vm297, %v724, %v726
  %v731 = vsel %vm297, %v722, %v724
  %v732 = vsel %vm297, %v728, %v722
  %v733 = vmul.f32 %v731, %v305
  %v734 = vmul.f32 %v730, %v309
  %v735 = vmul.f32 %v729, %v313
  %v736 = vmul.f32 %v732, %v317
  %737 = vst [vmem:[#allocation3 + $0xe0] sm:$0xff] %v733
  %738 = vst [vmem:[#allocation3 + $0xe8] sm:$0xff] %v734
  %739 = vst [vmem:[#allocation3 + $0xf0] sm:$0xff] %v735
  %740 = vst [vmem:[#allocation3 + $0xf8] sm:$0xff] %v736
  %741 = vrot.lane.b32.xlu0 %v589, 111
  %v742 = vpop.permute.xlu0 %741
  %743 = vrot.lane.b32.xlu0 %v590, 111
  %v744 = vpop.permute.xlu0 %743
  %745 = vrot.lane.b32.xlu0 %v591, 111
  %v746 = vpop.permute.xlu0 %745
  %747 = vrot.lane.b32.xlu0 %v592, 111
  %v748 = vpop.permute.xlu0 %747
  %v749 = vsel %vm334, %v746, %v748
  %v750 = vsel %vm334, %v744, %v746
  %v751 = vsel %vm334, %v742, %v744
  %v752 = vsel %vm334, %v748, %v742
  %v753 = vmul.f32 %v751, %v342
  %v754 = vmul.f32 %v750, %v346
  %v755 = vmul.f32 %v749, %v350
  %v756 = vmul.f32 %v752, %v354
  %757 = vst [vmem:[#allocation3 + $0x100] sm:$0xff] %v753
  %758 = vst [vmem:[#allocation3 + $0x108] sm:$0xff] %v754
  %759 = vst [vmem:[#allocation3 + $0x110] sm:$0xff] %v755
  %760 = vst [vmem:[#allocation3 + $0x118] sm:$0xff] %v756
  %v761 = vld [vmem:[%s2] sm:$0xff]
  %v762 = vld [vmem:[#allocation3] sm:$0xff]
  %v763 = vld [vmem:[#allocation3 + $0x8] sm:$0xff]
  %v764 = vld [vmem:[#allocation3 + $0x10] sm:$0xff]
  %v765 = vld [vmem:[#allocation3 + $0x18] sm:$0xff]
  %v766 = vld [vmem:[#allocation3 + $0x20] sm:$0xff]
  %v767 = vld [vmem:[#allocation3 + $0x28] sm:$0xff]
  %v768 = vld [vmem:[#allocation3 + $0x30] sm:$0xff]
  %v769 = vld [vmem:[#allocation3 + $0x38] sm:$0xff]
  %v770 = vld [vmem:[#allocation3 + $0x40] sm:$0xff]
  %v771 = vld [vmem:[#allocation3 + $0x48] sm:$0xff]
  %v772 = vld [vmem:[#allocation3 + $0x50] sm:$0xff]
  %v773 = vld [vmem:[#allocation3 + $0x58] sm:$0xff]
  %v774 = vld [vmem:[#allocation3 + $0x60] sm:$0xff]
  %v775 = vld [vmem:[#allocation3 + $0x68] sm:$0xff]
  %v776 = vld [vmem:[#allocation3 + $0x70] sm:$0xff]
  %v777 = vld [vmem:[#allocation3 + $0x78] sm:$0xff]
  %v778 = vld [vmem:[#allocation3 + $0x80] sm:$0xff]
  %v779 = vld [vmem:[#allocation3 + $0x88] sm:$0xff]
  %v780 = vld [vmem:[#allocation3 + $0x90] sm:$0xff]
  %v781 = vld [vmem:[#allocation3 + $0x98] sm:$0xff]
  %v782 = vld [vmem:[#allocation3 + $0xa0] sm:$0xff]
  %v783 = vld [vmem:[#allocation3 + $0xa8] sm:$0xff]
  %v784 = vld [vmem:[#allocation3 + $0xb0] sm:$0xff]
  %v785 = vld [vmem:[#allocation3 + $0xb8] sm:$0xff]
  %v786 = vld [vmem:[#allocation3 + $0xc0] sm:$0xff]
  %v787 = vld [vmem:[#allocation3 + $0xc8] sm:$0xff]
  %v788 = vld [vmem:[#allocation3 + $0xd0] sm:$0xff]
  %v789 = vld [vmem:[#allocation3 + $0xd8] sm:$0xff]
  %v790 = vld [vmem:[#allocation3 + $0xe0] sm:$0xff]
  %v791 = vld [vmem:[#allocation3 + $0xe8] sm:$0xff]
  %v792 = vld [vmem:[#allocation3 + $0xf0] sm:$0xff]
  %v793 = vld [vmem:[#allocation3 + $0xf8] sm:$0xff]
  %v794 = vld [vmem:[#allocation3 + $0x100] sm:$0xff]
  %v795 = vld [vmem:[#allocation3 + $0x108] sm:$0xff]
  %v796 = vld [vmem:[#allocation3 + $0x110] sm:$0xff]
  %v797 = vld [vmem:[#allocation3 + $0x118] sm:$0xff]
  %v799 = vsel %vm400, %v761, 0
  %801 = vmatprep.subr.mxu0 %v763
  %802 = vmatpush1.msra.mxu0 %v762
  %803 = vmatprep.subr.mxu0 %v767
  %804 = vmatpush1.msra.mxu0 %v766
  %805 = vmatprep.subr.mxu0 %v771
  %806 = vmatpush1.msra.mxu0 %v770
  %807 = vmatprep.subr.mxu0 %v775
  %808 = vmatpush1.msra.mxu0 %v774
  %809 = vmatprep.subr.mxu0 %v779
  %810 = vmatpush1.msra.mxu0 %v778
  %811 = vmatprep.subr.mxu0 %v783
  %812 = vmatpush1.msra.mxu0 %v782
  %813 = vmatprep.subr.mxu0 %v787
  %814 = vmatpush1.msra.mxu0 %v786
  %815 = vmatprep.subr.mxu0 %v791
  %816 = vmatpush1.msra.mxu0 %v790
  %817 = vmatprep.subr.mxu0 %v795
  %818 = vmatpush1.msra.mxu0 %v794
  %819 = vmatprep.subr.mxu0 0.0
  %820 = vmatpush1.msra.mxu0 0.0
  %821 = vmatprep.subr.mxu0 0.0
  %822 = vmatpush1.msra.mxu0 0.0
  %823 = vmatprep.subr.mxu0 0.0
  %824 = vmatpush1.msra.mxu0 0.0
  %825 = vmatprep.subr.mxu0 0.0
  %826 = vmatpush1.msra.mxu0 0.0
  %827 = vmatprep.subr.mxu0 0.0
  %828 = vmatpush1.msra.mxu0 0.0
  %829 = vmatprep.subr.mxu0 0.0
  %830 = vmatpush1.msra.mxu0 0.0
  %831 = vmatprep.subr.mxu0 0.0
  %832 = vmatpush1.msra.mxu0 0.0
  %833 = vmatprep.subr.mxu0 0.0
  %834 = vmatpush1.msra.mxu0 0.0
  %835 = vmatprep.subr.mxu0 0.0
  %836 = vmatpush1.msra.mxu0 0.0
  %837 = vmatprep.subr.mxu0 0.0
  %838 = vmatpush1.msra.mxu0 0.0
  %839 = vmatprep.subr.mxu0 0.0
  %840 = vmatpush1.msra.mxu0 0.0
  %841 = vmatprep.subr.mxu0 0.0
  %842 = vmatpush1.msra.mxu0 0.0
  %843 = vmatprep.subr.mxu0 0.0
  %844 = vmatpush1.msra.mxu0 0.0
  %845 = vmatprep.subr.mxu0 0.0
  %846 = vmatpush1.msra.mxu0 0.0
  %847 = vmatprep.subr.mxu0 0.0
  %848 = vmatpush1.msra.mxu0 0.0
  %849 = vmatprep.subr.mxu0 0.0
  %850 = vmatpush1.msra.mxu0 0.0
  %851 = vmatprep.subr.mxu0 0.0
  %852 = vmatpush1.msra.mxu0 0.0
  %853 = vmatprep.subr.mxu0 0.0
  %854 = vmatpush1.msra.mxu0 0.0
  %855 = vmatprep.subr.mxu0 0.0
  %856 = vmatpush1.msra.mxu0 0.0
  %857 = vmatprep.subr.mxu0 0.0
  %858 = vmatpush1.msra.mxu0 0.0
  %859 = vmatprep.subr.mxu0 0.0
  %860 = vmatpush1.msra.mxu0 0.0
  %861 = vmatprep.subr.mxu0 0.0
  %862 = vmatpush1.msra.mxu0 0.0
  %863 = vmatprep.subr.mxu0 0.0
  %864 = vmatpush1.msra.mxu0 0.0
  %865 = vmatprep.mubr.f32.mxu0 0.0
  %866 = vmatmul.mubr.f32.gmra.mrb[0].mxu0 %v799
  %v867 = vpop.f32.mrb[0].mxu0
  %v868 = vadd.f32 0.0, %v867
  %v869 = vpop.f32.mrb[0].mxu0
  %v870 = vadd.f32 0.0, %v869
  %871 = vdwg.mxu0
  %872 = vmatprep.subr.mxu0 %v765
  %873 = vmatpush1.msra.mxu0 %v764
  %874 = vmatprep.subr.mxu0 %v769
  %875 = vmatpush1.msra.mxu0 %v768
  %876 = vmatprep.subr.mxu0 %v773
  %877 = vmatpush1.msra.mxu0 %v772
  %878 = vmatprep.subr.mxu0 %v777
  %879 = vmatpush1.msra.mxu0 %v776
  %880 = vmatprep.subr.mxu0 %v781
  %881 = vmatpush1.msra.mxu0 %v780
  %882 = vmatprep.subr.mxu0 %v785
  %883 = vmatpush1.msra.mxu0 %v784
  %884 = vmatprep.subr.mxu0 %v789
  %885 = vmatpush1.msra.mxu0 %v788
  %886 = vmatprep.subr.mxu0 %v793
  %887 = vmatpush1.msra.mxu0 %v792
  %888 = vmatprep.subr.mxu0 %v797
  %889 = vmatpush1.msra.mxu0 %v796
  %890 = vmatprep.subr.mxu0 0.0
  %891 = vmatpush1.msra.mxu0 0.0
  %892 = vmatprep.subr.mxu0 0.0
  %893 = vmatpush1.msra.mxu0 0.0
  %894 = vmatprep.subr.mxu0 0.0
  %895 = vmatpush1.msra.mxu0 0.0
  %896 = vmatprep.subr.mxu0 0.0
  %897 = vmatpush1.msra.mxu0 0.0
  %898 = vmatprep.subr.mxu0 0.0
  %899 = vmatpush1.msra.mxu0 0.0
  %900 = vmatprep.subr.mxu0 0.0
  %901 = vmatpush1.msra.mxu0 0.0
  %902 = vmatprep.subr.mxu0 0.0
  %903 = vmatpush1.msra.mxu0 0.0
  %904 = vmatprep.subr.mxu0 0.0
  %905 = vmatpush1.msra.mxu0 0.0
  %906 = vmatprep.subr.mxu0 0.0
  %907 = vmatpush1.msra.mxu0 0.0
  %908 = vmatprep.subr.mxu0 0.0
  %909 = vmatpush1.msra.mxu0 0.0
  %910 = vmatprep.subr.mxu0 0.0
  %911 = vmatpush1.msra.mxu0 0.0
  %912 = vmatprep.subr.mxu0 0.0
  %913 = vmatpush1.msra.mxu0 0.0
  %914 = vmatprep.subr.mxu0 0.0
  %915 = vmatpush1.msra.mxu0 0.0
  %916 = vmatprep.subr.mxu0 0.0
  %917 = vmatpush1.msra.mxu0 0.0
  %918 = vmatprep.subr.mxu0 0.0
  %919 = vmatpush1.msra.mxu0 0.0
  %920 = vmatprep.subr.mxu0 0.0
  %921 = vmatpush1.msra.mxu0 0.0
  %922 = vmatprep.subr.mxu0 0.0
  %923 = vmatpush1.msra.mxu0 0.0
  %924 = vmatprep.subr.mxu0 0.0
  %925 = vmatpush1.msra.mxu0 0.0
  %926 = vmatprep.subr.mxu0 0.0
  %927 = vmatpush1.msra.mxu0 0.0
  %928 = vmatprep.subr.mxu0 0.0
  %929 = vmatpush1.msra.mxu0 0.0
  %930 = vmatprep.subr.mxu0 0.0
  %931 = vmatpush1.msra.mxu0 0.0
  %932 = vmatprep.subr.mxu0 0.0
  %933 = vmatpush1.msra.mxu0 0.0
  %934 = vmatprep.subr.mxu0 0.0
  %935 = vmatpush1.msra.mxu0 0.0
  %936 = vmatprep.mubr.f32.mxu0 0.0
  %937 = vmatmul.mubr.f32.gmra.mrb[0].mxu0 %v799
  %v938 = vpop.f32.mrb[0].mxu0
  %v939 = vadd.f32 0.0, %v938
  %v940 = vpop.f32.mrb[0].mxu0
  %v941 = vadd.f32 0.0, %v940
  %942 = vdwg.mxu0
  %v943 = vadd.f32 %v868, %v870
  %v944 = vadd.f32 %v943, %v939
  %v945 = vadd.f32 %v944, %v941
  %946 = vadd.xlane.f32.xlu0 %v945
  %v947 = vpop.xlane.xlu0 %946
  %v948 = vmul.f32 %v947, 0.001953125
  %v949 = vsub.f32 %v868, %v948
  %v950 = vsub.f32 %v870, %v948
  %v951 = vsub.f32 %v939, %v948
  %v952 = vsub.f32 %v941, %v948
  %v953 = vmul.f32 %v949, %v949
  %v954 = vmul.f32 %v950, %v950
  %v955 = vmul.f32 %v951, %v951
  %v956 = vmul.f32 %v952, %v952
  %v957 = vadd.f32 %v953, %v954
  %v958 = vadd.f32 %v957, %v955
  %v959 = vadd.f32 %v958, %v956
  %960 = vadd.xlane.f32.xlu0 %v959
  %v961 = vpop.xlane.xlu0 %960
  %v962 = vmul.f32 %v961, 0.001953125
  %v963 = vld [vmem:[%s6] sm:$0xff]
  %v964 = vadd.f32 %v962, 1e-05
  %v965 = vrsqrt.pop %v964
  %v966 = vmul.f32 %v963, %v965
  %968 = vset.pattern.permute.xlu0 0
  %969 = vperm.xlu0 %968, %v966
  %v970 = vpop.permute.xlu0 %969
  %v972 = vmul.f32 %v949, %v970
  %v973 = vmul.f32 %v950, %v970
  %v974 = vmul.f32 %v951, %v970
  %v975 = vmul.f32 %v952, %v970
  %v976 = vld [vmem:[%s7] sm:$0xff]
  %978 = vset.pattern.permute.xlu0 0
  %979 = vperm.xlu0 %978, %v976
  %v980 = vpop.permute.xlu0 %979
  %v982 = vadd.f32 %v972, %v980
  %v983 = vadd.f32 %v973, %v980
  %v984 = vadd.f32 %v974, %v980
  %v985 = vadd.f32 %v975, %v980
  %v986 = vmax.f32 %v982, 0.0
  %v987 = vmax.f32 %v983, 0.0
  %v988 = vmax.f32 %v984, 0.0
  %v989 = vmax.f32 %v985, 0.0
  %990 = vst [vmem:[%s8] sm:$0xff] %v986
  %991 = vst [vmem:[%s8 + $0x8] sm:$0xff] %v987
  %992 = vst [vmem:[%s8 + $0x10] sm:$0xff] %v988
  %993 = vst [vmem:[%s8 + $0x18] sm:$0xff] %v989
  // Predicated region
  $region34: #{down_forward.1} parent=0 // pred_check
    _
  $region35: #{down_forward.1} parent=0 // pred_check_branch
    %995 = sbr.rel (0) target = $region37
  $region36: #{down_forward.1} parent=0 // pred_region
    _
  $region37: #{down_forward.1} parent=0 // pred_fallthru
    _
  // Predicated region
  $region38: #{down_forward.1} parent=0 // pred_check
    _
  $region39: #{down_forward.1} parent=0 // pred_check_branch
    %997 = sbr.rel (0) target = $region41
  $region40: #{down_forward.1} parent=0 // pred_region
    _
  $region41: #{down_forward.1} parent=0 // pred_fallthru
    _

</llo_original>
